<compile_context>
chip_gen: v7x
topology: tpu7x:2x2x1
jax: 0.10.0
libtpu: 0.0.40
codegen_flags: <defaults>
</compile_context>

<pallas_src>
import jax
import jax.numpy as jnp
from jax.experimental import pallas as pl
from jax.experimental.pallas import tpu as pltpu


def _round_up(a, b):
    return (a + b - 1) // b * b


def _lane_align():
    """256-wide MXU on v6e/v7x, 128 on v5e/older. Best-effort detection."""
    try:
        kind = jax.devices()[0].device_kind.lower()
    except Exception:
        return 128
    if "v6" in kind or "v7" in kind:
        return 256
    return 128


# ---------------------------------------------------------------------------
# Fused kernel: h = x; for each layer: h = relu(bf16(h) @ W_bf16 + b); store h.
# Activations never leave VMEM/vregs between layers.
# ---------------------------------------------------------------------------
def _make_fused_ae_kernel(num_layers):
    def kernel(*refs):
        x_ref = refs[0]
        o_ref = refs[-1]
        h = x_ref[...]                                   # f32 activations
        for l in range(num_layers):
            w_ref = refs[1 + 2 * l]                      # bf16 (K_pad, N_pad)
            b_ref = refs[2 + 2 * l]                      # f32  (1, N_pad)
            h = jnp.dot(h.astype(jnp.bfloat16), w_ref[...],
                        preferred_element_type=jnp.float32)
            h = jnp.maximum(h + b_ref[...], 0.0)         # f32 epilogue on VPU
        o_ref[...] = h.astype(o_ref.dtype)
    return kernel


# ---------------------------------------------------------------------------
# One-time parameter prep: pad each layer to its own lane-aligned width, cast
# weights to bf16, keep biases f32. (Padding is mathematically inert: padded
# weight rows/cols are zero and zero bias -> relu(0)=0 never propagates.)
# ---------------------------------------------------------------------------
def prepare_autoencoder_params(enc_params, dec_params, d_in, lane_align=None):
    if lane_align is None:
        lane_align = _lane_align()
    params = list(enc_params) + list(dec_params)
    logical_dims = [d_in] + [w.shape[1] for w, _ in params]
    padded_dims = [_round_up(max(d, 1), lane_align) for d in logical_dims]

    padded = []
    for l, (w, b) in enumerate(params):
        k, n = w.shape
        pk, pn = padded_dims[l], padded_dims[l + 1]
        w_p = jnp.pad(w, ((0, pk - k), (0, pn - n))).astype(jnp.bfloat16)
        b_p = jnp.pad(b.reshape(1, n), ((0, 0), (0, pn - n))).astype(jnp.float32)
        padded.append((w_p, b_p))

    return {
        "padded_params": padded,
        "logical_dims": logical_dims,
        "padded_dims": padded_dims,
        "lane_align": lane_align,
    }


def autoencoder_forward(x, prepped):
    """Fused Autoencoder forward.  x: (batch, layer_dims[0]) f32.

    Note: torch.relu(encoder(x)) is a no-op because the encoder already ends
    in ReLU (relu is idempotent); semantics preserved.
    """
    padded = prepped["padded_params"]
    logical_dims = prepped["logical_dims"]
    p_dims = prepped["padded_dims"]
    num_layers = len(padded)

    M, d_in = x.shape
    assert d_in == logical_dims[0]
    d_out = logical_dims[-1]
    P_in, P_out = p_dims[0], p_dims[-1]
    itemsize = 4  # f32 activations

    # Batch tile: multiple of 8 sublanes; ensure >=2 grid steps for M >= 16 so
    # v7x's second TensorCore gets work; cap at 256 rows.
    m_tile = min(256, max(8, _round_up(_round_up(M, 8) // 2, 8)))

    def vmem_bytes(mt):
        # single-buffered weights/biases + double-buffered activation tiles
        w_bytes = sum(w.size * w.dtype.itemsize + b.size * b.dtype.itemsize
                      for w, b in padded)
        act_bytes = 2 * mt * P_in * itemsize + 2 * mt * P_out * itemsize
        inter_bytes = 3 * mt * max(p_dims) * itemsize   # live intermediates
        return w_bytes + act_bytes + inter_bytes

    VMEM_BUDGET = 56 * 1024 * 1024   # headroom under v7x's 64 MiB physical VMEM
    while m_tile > 8 and vmem_bytes(m_tile) > VMEM_BUDGET:
        m_tile = max(8, _round_up(m_tile // 2, 8))

    M_pad = _round_up(M, m_tile)
    x_p = jnp.pad(x.astype(jnp.float32), ((0, M_pad - M), (0, P_in - d_in)))

    flat_args = [x_p]
    specs_sb = [pl.BlockSpec((m_tile, P_in), lambda i: (i, 0))]
    specs_db = [pl.BlockSpec((m_tile, P_in), lambda i: (i, 0))]
    for l, (w_p, b_p) in enumerate(padded):
        flat_args.append(w_p)
        flat_args.append(b_p)
        pk, pn = p_dims[l], p_dims[l + 1]
        # Grid-invariant weights/biases -> single-buffer (halves resident VMEM).
        specs_sb.append(pl.BlockSpec((pk, pn), lambda i: (0, 0),
                                     pipeline_mode=pl.Buffered(1)))
        specs_sb.append(pl.BlockSpec((1, pn), lambda i: (0, 0),
                                     pipeline_mode=pl.Buffered(1)))
        specs_db.append(pl.BlockSpec((pk, pn), lambda i: (0, 0)))
        specs_db.append(pl.BlockSpec((1, pn), lambda i: (0, 0)))
    out_spec = pl.BlockSpec((m_tile, P_out), lambda i: (i, 0))

    # CostEstimate from logical (unpadded) dims.
    flops = sum(2 * M * logical_dims[l] * logical_dims[l + 1]
                for l in range(num_layers))
    bytes_accessed = (
        M * d_in * itemsize + M * d_out * itemsize
        + sum(logical_dims[l] * logical_dims[l + 1] * 2      # bf16 weights
              + logical_dims[l + 1] * itemsize               # f32 biases
              for l in range(num_layers)))

    est_vmem = vmem_bytes(m_tile)
    vmem_limit = None
    if est_vmem > (32 << 20):   # only raise above the default scoped limit
        vmem_limit = min(VMEM_BUDGET, _round_up(est_vmem, 1 << 20) + (4 << 20))

    compiler_params = pltpu.CompilerParams(
        dimension_semantics=("parallel",),
        vmem_limit_bytes=vmem_limit)

    def build_call(in_specs):
        return pl.pallas_call(
            _make_fused_ae_kernel(num_layers),
            out_shape=jax.ShapeDtypeStruct((M_pad, P_out), jnp.float32),
            grid=(M_pad // m_tile,),
            in_specs=in_specs,
            out_specs=out_spec,
            compiler_params=compiler_params,
            cost_estimate=pl.CostEstimate(
                flops=flops, transcendentals=0, bytes_accessed=bytes_accessed),
        )

    try:
        out_p = build_call(specs_sb)(*flat_args)
    except Exception:
        # Fallback: drop the single-buffer hint if this jax build rejects it.
        out_p = build_call(specs_db)(*flat_args)

    return out_p[:M, :d_out]


# ---------------------------------------------------------------------------
# Parameter init matching nn.Linear defaults; weights stored (in, out).
# ---------------------------------------------------------------------------
def init_autoencoder_params(layer_dims, key):
    enc, dec = [], []
    for i in range(1, len(layer_dims)):
        key, kw, kb = jax.random.split(key, 3)
        fan_in, fan_out = layer_dims[i - 1], layer_dims[i]
        bound = 1.0 / jnp.sqrt(fan_in)
        w = jax.random.uniform(kw, (fan_in, fan_out), jnp.float32, -bound, bound)
        b = jax.random.uniform(kb, (fan_out,), jnp.float32, -bound, bound)
        enc.append((w, b))
    for i in range(len(layer_dims) - 1, 0, -1):
        key, kw, kb = jax.random.split(key, 3)
        fan_in, fan_out = layer_dims[i], layer_dims[i - 1]
        bound = 1.0 / jnp.sqrt(fan_in)
        w = jax.random.uniform(kw, (fan_in, fan_out), jnp.float32, -bound, bound)
        b = jax.random.uniform(kb, (fan_out,), jnp.float32, -bound, bound)
        dec.append((w, b))
    return enc, dec


if __name__ == "__main__":
    key = jax.random.PRNGKey(0)
    layer_dims = [32, 16, 8]   # input dim 32, bottleneck 8
    batch = 16                 # >=16 -> 2 grid steps on the parallel batch axis

    key, kx, kp = jax.random.split(key, 3)
    x = jax.random.normal(kx, (batch, layer_dims[0]), jnp.float32)
    enc_params, dec_params = init_autoencoder_params(layer_dims, kp)

    # One-time padded/bf16 parameter prep (hoisted out of the forward).
    prepped = prepare_autoencoder_params(enc_params, dec_params, layer_dims[0])

    out = autoencoder_forward(x, prepped)
    out = jax.block_until_ready(out)

    # Pure-JAX f32 reference (same math as the PyTorch module). The kernel runs
    # its matmuls in bf16, so the tolerance is relaxed accordingly.
    def ref_forward(x, enc, dec):
        h = x
        for w, b in enc:
            h = jnp.maximum(h @ w + b, 0.0)
        h = jnp.maximum(h, 0.0)   # torch.relu(encoder(x)) -- idempotent
        for w, b in dec:
            h = jnp.maximum(h @ w + b, 0.0)
        return h

    ref = ref_forward(x, enc_params, dec_params)
    assert out.shape == (batch, layer_dims[0])
    assert jnp.allclose(out, ref, atol=5e-2, rtol=5e-2), \
        float(jnp.max(jnp.abs(out - ref)))

    print("KERNEL_OK")
</pallas_src>

<mosaic_0001>
module attributes {stable_mosaic.version = 11 : i64} {
  func.func @kernel(%arg0: i32, %arg1: memref<8x128xf32, #tpu.memory_space<vmem>>, %arg2: memref<128x128xbf16, #tpu.memory_space<vmem>>, %arg3: memref<1x128xf32, #tpu.memory_space<vmem>>, %arg4: memref<128x128xbf16, #tpu.memory_space<vmem>>, %arg5: memref<1x128xf32, #tpu.memory_space<vmem>>, %arg6: memref<128x128xbf16, #tpu.memory_space<vmem>>, %arg7: memref<1x128xf32, #tpu.memory_space<vmem>>, %arg8: memref<128x128xbf16, #tpu.memory_space<vmem>>, %arg9: memref<1x128xf32, #tpu.memory_space<vmem>>, %arg10: memref<8x128xf32, #tpu.memory_space<vmem>>) attributes {dimension_semantics = [#tpu.dimension_semantics<parallel>], iteration_bounds = array<i64: 2>, scalar_prefetch = 0 : i64, scratch_operands = 0 : i64, tpu.core_type = #tpu.core_type<tc>, window_params = [{transform_indices = @transform_0, window_bounds = array<i64: 8, 128>}, {pipeline_mode = #tpu.pipeline_mode<synchronous>, transform_indices = @transform_1, window_bounds = array<i64: 128, 128>}, {pipeline_mode = #tpu.pipeline_mode<synchronous>, transform_indices = @transform_2, window_bounds = array<i64: 1, 128>}, {pipeline_mode = #tpu.pipeline_mode<synchronous>, transform_indices = @transform_3, window_bounds = array<i64: 128, 128>}, {pipeline_mode = #tpu.pipeline_mode<synchronous>, transform_indices = @transform_4, window_bounds = array<i64: 1, 128>}, {pipeline_mode = #tpu.pipeline_mode<synchronous>, transform_indices = @transform_5, window_bounds = array<i64: 128, 128>}, {pipeline_mode = #tpu.pipeline_mode<synchronous>, transform_indices = @transform_6, window_bounds = array<i64: 1, 128>}, {pipeline_mode = #tpu.pipeline_mode<synchronous>, transform_indices = @transform_7, window_bounds = array<i64: 128, 128>}, {pipeline_mode = #tpu.pipeline_mode<synchronous>, transform_indices = @transform_8, window_bounds = array<i64: 1, 128>}, {transform_indices = @transform_9, window_bounds = array<i64: 8, 128>}]} {
    %c0 = arith.constant 0 : index
    %c0_0 = arith.constant 0 : index
    %0 = vector.load %arg1[%c0, %c0_0] : memref<8x128xf32, #tpu.memory_space<vmem>>, vector<8x128xf32>
    %1 = arith.truncf %0 : vector<8x128xf32> to vector<8x128xbf16>
    %c0_1 = arith.constant 0 : index
    %c0_2 = arith.constant 0 : index
    %2 = vector.load %arg2[%c0_1, %c0_2] : memref<128x128xbf16, #tpu.memory_space<vmem>>, vector<128x128xbf16>
    %cst = arith.constant dense<0.000000e+00> : vector<8x128xf32>
    %3 = tpu.matmul %1, %2, %cst {dimension_numbers = #tpu.dot_dimension_numbers<[1], [0], [0], [1], [0, 0, 1, 1], [], []>} : vector<8x128xbf16>, vector<128x128xbf16>, vector<8x128xf32> -> vector<8x128xf32>
    %c0_3 = arith.constant 0 : index
    %c0_4 = arith.constant 0 : index
    %4 = vector.load %arg3[%c0_3, %c0_4] : memref<1x128xf32, #tpu.memory_space<vmem>>, vector<1x128xf32>
    %5 = vector.broadcast %4 : vector<1x128xf32> to vector<8x128xf32>
    %6 = arith.addf %3, %5 : vector<8x128xf32>
    %cst_5 = arith.constant 0.000000e+00 : f32
    %7 = vector.broadcast %cst_5 : f32 to vector<8x128xf32>
    %8 = arith.maximumf %6, %7 : vector<8x128xf32>
    %9 = arith.truncf %8 : vector<8x128xf32> to vector<8x128xbf16>
    %c0_6 = arith.constant 0 : index
    %c0_7 = arith.constant 0 : index
    %10 = vector.load %arg4[%c0_6, %c0_7] : memref<128x128xbf16, #tpu.memory_space<vmem>>, vector<128x128xbf16>
    %cst_8 = arith.constant dense<0.000000e+00> : vector<8x128xf32>
    %11 = tpu.matmul %9, %10, %cst_8 {dimension_numbers = #tpu.dot_dimension_numbers<[1], [0], [0], [1], [0, 0, 1, 1], [], []>} : vector<8x128xbf16>, vector<128x128xbf16>, vector<8x128xf32> -> vector<8x128xf32>
    %c0_9 = arith.constant 0 : index
    %c0_10 = arith.constant 0 : index
    %12 = vector.load %arg5[%c0_9, %c0_10] : memref<1x128xf32, #tpu.memory_space<vmem>>, vector<1x128xf32>
    %13 = vector.broadcast %12 : vector<1x128xf32> to vector<8x128xf32>
    %14 = arith.addf %11, %13 : vector<8x128xf32>
    %cst_11 = arith.constant 0.000000e+00 : f32
    %15 = vector.broadcast %cst_11 : f32 to vector<8x128xf32>
    %16 = arith.maximumf %14, %15 : vector<8x128xf32>
    %17 = arith.truncf %16 : vector<8x128xf32> to vector<8x128xbf16>
    %c0_12 = arith.constant 0 : index
    %c0_13 = arith.constant 0 : index
    %18 = vector.load %arg6[%c0_12, %c0_13] : memref<128x128xbf16, #tpu.memory_space<vmem>>, vector<128x128xbf16>
    %cst_14 = arith.constant dense<0.000000e+00> : vector<8x128xf32>
    %19 = tpu.matmul %17, %18, %cst_14 {dimension_numbers = #tpu.dot_dimension_numbers<[1], [0], [0], [1], [0, 0, 1, 1], [], []>} : vector<8x128xbf16>, vector<128x128xbf16>, vector<8x128xf32> -> vector<8x128xf32>
    %c0_15 = arith.constant 0 : index
    %c0_16 = arith.constant 0 : index
    %20 = vector.load %arg7[%c0_15, %c0_16] : memref<1x128xf32, #tpu.memory_space<vmem>>, vector<1x128xf32>
    %21 = vector.broadcast %20 : vector<1x128xf32> to vector<8x128xf32>
    %22 = arith.addf %19, %21 : vector<8x128xf32>
    %cst_17 = arith.constant 0.000000e+00 : f32
    %23 = vector.broadcast %cst_17 : f32 to vector<8x128xf32>
    %24 = arith.maximumf %22, %23 : vector<8x128xf32>
    %25 = arith.truncf %24 : vector<8x128xf32> to vector<8x128xbf16>
    %c0_18 = arith.constant 0 : index
    %c0_19 = arith.constant 0 : index
    %26 = vector.load %arg8[%c0_18, %c0_19] : memref<128x128xbf16, #tpu.memory_space<vmem>>, vector<128x128xbf16>
    %cst_20 = arith.constant dense<0.000000e+00> : vector<8x128xf32>
    %27 = tpu.matmul %25, %26, %cst_20 {dimension_numbers = #tpu.dot_dimension_numbers<[1], [0], [0], [1], [0, 0, 1, 1], [], []>} : vector<8x128xbf16>, vector<128x128xbf16>, vector<8x128xf32> -> vector<8x128xf32>
    %c0_21 = arith.constant 0 : index
    %c0_22 = arith.constant 0 : index
    %28 = vector.load %arg9[%c0_21, %c0_22] : memref<1x128xf32, #tpu.memory_space<vmem>>, vector<1x128xf32>
    %29 = vector.broadcast %28 : vector<1x128xf32> to vector<8x128xf32>
    %30 = arith.addf %27, %29 : vector<8x128xf32>
    %cst_23 = arith.constant 0.000000e+00 : f32
    %31 = vector.broadcast %cst_23 : f32 to vector<8x128xf32>
    %32 = arith.maximumf %30, %31 : vector<8x128xf32>
    %c0_24 = arith.constant 0 : index
    %c0_25 = arith.constant 0 : index
    %33 = vector.load %arg10[%c0_24, %c0_25] : memref<8x128xf32, #tpu.memory_space<vmem>>, vector<8x128xf32>
    tpu.vector_store %arg10[%c0_24, %c0_25], %32 {strides = array<i32>} : memref<8x128xf32, #tpu.memory_space<vmem>>, vector<8x128xf32>,
    return
  }
  func.func @transform_0(%arg0: i32) -> (i32, i32) {
    %c0_i32 = arith.constant 0 : i32
    %c0_i32_0 = arith.constant 0 : i32
    return %arg0, %c0_i32 : i32, i32
  }
  func.func @transform_1(%arg0: i32) -> (i32, i32) {
    %c0_i32 = arith.constant 0 : i32
    %c0_i32_0 = arith.constant 0 : i32
    %c0_i32_1 = arith.constant 0 : i32
    return %c0_i32, %c0_i32_0 : i32, i32
  }
  func.func @transform_2(%arg0: i32) -> (i32, i32) {
    %c0_i32 = arith.constant 0 : i32
    %c0_i32_0 = arith.constant 0 : i32
    %c0_i32_1 = arith.constant 0 : i32
    return %c0_i32, %c0_i32_0 : i32, i32
  }
  func.func @transform_3(%arg0: i32) -> (i32, i32) {
    %c0_i32 = arith.constant 0 : i32
    %c0_i32_0 = arith.constant 0 : i32
    %c0_i32_1 = arith.constant 0 : i32
    return %c0_i32, %c0_i32_0 : i32, i32
  }
  func.func @transform_4(%arg0: i32) -> (i32, i32) {
    %c0_i32 = arith.constant 0 : i32
    %c0_i32_0 = arith.constant 0 : i32
    %c0_i32_1 = arith.constant 0 : i32
    return %c0_i32, %c0_i32_0 : i32, i32
  }
  func.func @transform_5(%arg0: i32) -> (i32, i32) {
    %c0_i32 = arith.constant 0 : i32
    %c0_i32_0 = arith.constant 0 : i32
    %c0_i32_1 = arith.constant 0 : i32
    return %c0_i32, %c0_i32_0 : i32, i32
  }
  func.func @transform_6(%arg0: i32) -> (i32, i32) {
    %c0_i32 = arith.constant 0 : i32
    %c0_i32_0 = arith.constant 0 : i32
    %c0_i32_1 = arith.constant 0 : i32
    return %c0_i32, %c0_i32_0 : i32, i32
  }
  func.func @transform_7(%arg0: i32) -> (i32, i32) {
    %c0_i32 = arith.constant 0 : i32
    %c0_i32_0 = arith.constant 0 : i32
    %c0_i32_1 = arith.constant 0 : i32
    return %c0_i32, %c0_i32_0 : i32, i32
  }
  func.func @transform_8(%arg0: i32) -> (i32, i32) {
    %c0_i32 = arith.constant 0 : i32
    %c0_i32_0 = arith.constant 0 : i32
    %c0_i32_1 = arith.constant 0 : i32
    return %c0_i32, %c0_i32_0 : i32, i32
  }
  func.func @transform_9(%arg0: i32) -> (i32, i32) {
    %c0_i32 = arith.constant 0 : i32
    %c0_i32_0 = arith.constant 0 : i32
    return %arg0, %c0_i32 : i32, i32
  }
}

module attributes {stable_mosaic.version = 11 : i64} {
  func.func @kernel(%arg0: i32, %arg1: memref<8x128xf32, #tpu.memory_space<vmem>>, %arg2: memref<128x128xbf16, #tpu.memory_space<vmem>>, %arg3: memref<1x128xf32, #tpu.memory_space<vmem>>, %arg4: memref<128x128xbf16, #tpu.memory_space<vmem>>, %arg5: memref<1x128xf32, #tpu.memory_space<vmem>>, %arg6: memref<128x128xbf16, #tpu.memory_space<vmem>>, %arg7: memref<1x128xf32, #tpu.memory_space<vmem>>, %arg8: memref<128x128xbf16, #tpu.memory_space<vmem>>, %arg9: memref<1x128xf32, #tpu.memory_space<vmem>>, %arg10: memref<8x128xf32, #tpu.memory_space<vmem>>) attributes {dimension_semantics = [#tpu.dimension_semantics<parallel>], iteration_bounds = array<i64: 2>, scalar_prefetch = 0 : i64, scratch_operands = 0 : i64, tpu.core_type = #tpu.core_type<tc>, window_params = [{transform_indices = @transform_0, window_bounds = array<i64: 8, 128>}, {pipeline_mode = #tpu.pipeline_mode<synchronous>, transform_indices = @transform_1, window_bounds = array<i64: 128, 128>}, {pipeline_mode = #tpu.pipeline_mode<synchronous>, transform_indices = @transform_2, window_bounds = array<i64: 1, 128>}, {pipeline_mode = #tpu.pipeline_mode<synchronous>, transform_indices = @transform_3, window_bounds = array<i64: 128, 128>}, {pipeline_mode = #tpu.pipeline_mode<synchronous>, transform_indices = @transform_4, window_bounds = array<i64: 1, 128>}, {pipeline_mode = #tpu.pipeline_mode<synchronous>, transform_indices = @transform_5, window_bounds = array<i64: 128, 128>}, {pipeline_mode = #tpu.pipeline_mode<synchronous>, transform_indices = @transform_6, window_bounds = array<i64: 1, 128>}, {pipeline_mode = #tpu.pipeline_mode<synchronous>, transform_indices = @transform_7, window_bounds = array<i64: 128, 128>}, {pipeline_mode = #tpu.pipeline_mode<synchronous>, transform_indices = @transform_8, window_bounds = array<i64: 1, 128>}, {transform_indices = @transform_9, window_bounds = array<i64: 8, 128>}]} {
    %c0 = arith.constant 0 : index
    %c0_0 = arith.constant 0 : index
    %0 = vector.load %arg1[%c0, %c0_0] : memref<8x128xf32, #tpu.memory_space<vmem>>, vector<8x128xf32>
    %1 = arith.truncf %0 : vector<8x128xf32> to vector<8x128xbf16>
    %c0_1 = arith.constant 0 : index
    %c0_2 = arith.constant 0 : index
    %2 = vector.load %arg2[%c0_1, %c0_2] : memref<128x128xbf16, #tpu.memory_space<vmem>>, vector<128x128xbf16>
    %cst = arith.constant dense<0.000000e+00> : vector<8x128xf32>
    %3 = tpu.matmul %1, %2, %cst {dimension_numbers = #tpu.dot_dimension_numbers<[1], [0], [0], [1], [0, 0, 1, 1], [], []>} : vector<8x128xbf16>, vector<128x128xbf16>, vector<8x128xf32> -> vector<8x128xf32>
    %c0_3 = arith.constant 0 : index
    %c0_4 = arith.constant 0 : index
    %4 = vector.load %arg3[%c0_3, %c0_4] : memref<1x128xf32, #tpu.memory_space<vmem>>, vector<1x128xf32>
    %5 = vector.broadcast %4 : vector<1x128xf32> to vector<8x128xf32>
    %6 = arith.addf %3, %5 : vector<8x128xf32>
    %cst_5 = arith.constant 0.000000e+00 : f32
    %7 = vector.broadcast %cst_5 : f32 to vector<8x128xf32>
    %8 = arith.maximumf %6, %7 : vector<8x128xf32>
    %9 = arith.truncf %8 : vector<8x128xf32> to vector<8x128xbf16>
    %c0_6 = arith.constant 0 : index
    %c0_7 = arith.constant 0 : index
    %10 = vector.load %arg4[%c0_6, %c0_7] : memref<128x128xbf16, #tpu.memory_space<vmem>>, vector<128x128xbf16>
    %cst_8 = arith.constant dense<0.000000e+00> : vector<8x128xf32>
    %11 = tpu.matmul %9, %10, %cst_8 {dimension_numbers = #tpu.dot_dimension_numbers<[1], [0], [0], [1], [0, 0, 1, 1], [], []>} : vector<8x128xbf16>, vector<128x128xbf16>, vector<8x128xf32> -> vector<8x128xf32>
    %c0_9 = arith.constant 0 : index
    %c0_10 = arith.constant 0 : index
    %12 = vector.load %arg5[%c0_9, %c0_10] : memref<1x128xf32, #tpu.memory_space<vmem>>, vector<1x128xf32>
    %13 = vector.broadcast %12 : vector<1x128xf32> to vector<8x128xf32>
    %14 = arith.addf %11, %13 : vector<8x128xf32>
    %cst_11 = arith.constant 0.000000e+00 : f32
    %15 = vector.broadcast %cst_11 : f32 to vector<8x128xf32>
    %16 = arith.maximumf %14, %15 : vector<8x128xf32>
    %17 = arith.truncf %16 : vector<8x128xf32> to vector<8x128xbf16>
    %c0_12 = arith.constant 0 : index
    %c0_13 = arith.constant 0 : index
    %18 = vector.load %arg6[%c0_12, %c0_13] : memref<128x128xbf16, #tpu.memory_space<vmem>>, vector<128x128xbf16>
    %cst_14 = arith.constant dense<0.000000e+00> : vector<8x128xf32>
    %19 = tpu.matmul %17, %18, %cst_14 {dimension_numbers = #tpu.dot_dimension_numbers<[1], [0], [0], [1], [0, 0, 1, 1], [], []>} : vector<8x128xbf16>, vector<128x128xbf16>, vector<8x128xf32> -> vector<8x128xf32>
    %c0_15 = arith.constant 0 : index
    %c0_16 = arith.constant 0 : index
    %20 = vector.load %arg7[%c0_15, %c0_16] : memref<1x128xf32, #tpu.memory_space<vmem>>, vector<1x128xf32>
    %21 = vector.broadcast %20 : vector<1x128xf32> to vector<8x128xf32>
    %22 = arith.addf %19, %21 : vector<8x128xf32>
    %cst_17 = arith.constant 0.000000e+00 : f32
    %23 = vector.broadcast %cst_17 : f32 to vector<8x128xf32>
    %24 = arith.maximumf %22, %23 : vector<8x128xf32>
    %25 = arith.truncf %24 : vector<8x128xf32> to vector<8x128xbf16>
    %c0_18 = arith.constant 0 : index
    %c0_19 = arith.constant 0 : index
    %26 = vector.load %arg8[%c0_18, %c0_19] : memref<128x128xbf16, #tpu.memory_space<vmem>>, vector<128x128xbf16>
    %cst_20 = arith.constant dense<0.000000e+00> : vector<8x128xf32>
    %27 = tpu.matmul %25, %26, %cst_20 {dimension_numbers = #tpu.dot_dimension_numbers<[1], [0], [0], [1], [0, 0, 1, 1], [], []>} : vector<8x128xbf16>, vector<128x128xbf16>, vector<8x128xf32> -> vector<8x128xf32>
    %c0_21 = arith.constant 0 : index
    %c0_22 = arith.constant 0 : index
    %28 = vector.load %arg9[%c0_21, %c0_22] : memref<1x128xf32, #tpu.memory_space<vmem>>, vector<1x128xf32>
    %29 = vector.broadcast %28 : vector<1x128xf32> to vector<8x128xf32>
    %30 = arith.addf %27, %29 : vector<8x128xf32>
    %cst_23 = arith.constant 0.000000e+00 : f32
    %31 = vector.broadcast %cst_23 : f32 to vector<8x128xf32>
    %32 = arith.maximumf %30, %31 : vector<8x128xf32>
    %c0_24 = arith.constant 0 : index
    %c0_25 = arith.constant 0 : index
    %33 = vector.load %arg10[%c0_24, %c0_25] : memref<8x128xf32, #tpu.memory_space<vmem>>, vector<8x128xf32>
    tpu.vector_store %arg10[%c0_24, %c0_25], %32 {strides = array<i32>} : memref<8x128xf32, #tpu.memory_space<vmem>>, vector<8x128xf32>,
    return
  }
  func.func @transform_0(%arg0: i32) -> (i32, i32) {
    %c0_i32 = arith.constant 0 : i32
    %c0_i32_0 = arith.constant 0 : i32
    return %arg0, %c0_i32 : i32, i32
  }
  func.func @transform_1(%arg0: i32) -> (i32, i32) {
    %c0_i32 = arith.constant 0 : i32
    %c0_i32_0 = arith.constant 0 : i32
    %c0_i32_1 = arith.constant 0 : i32
    return %c0_i32, %c0_i32_0 : i32, i32
  }
  func.func @transform_2(%arg0: i32) -> (i32, i32) {
    %c0_i32 = arith.constant 0 : i32
    %c0_i32_0 = arith.constant 0 : i32
    %c0_i32_1 = arith.constant 0 : i32
    return %c0_i32, %c0_i32_0 : i32, i32
  }
  func.func @transform_3(%arg0: i32) -> (i32, i32) {
    %c0_i32 = arith.constant 0 : i32
    %c0_i32_0 = arith.constant 0 : i32
    %c0_i32_1 = arith.constant 0 : i32
    return %c0_i32, %c0_i32_0 : i32, i32
  }
  func.func @transform_4(%arg0: i32) -> (i32, i32) {
    %c0_i32 = arith.constant 0 : i32
    %c0_i32_0 = arith.constant 0 : i32
    %c0_i32_1 = arith.constant 0 : i32
    return %c0_i32, %c0_i32_0 : i32, i32
  }
  func.func @transform_5(%arg0: i32) -> (i32, i32) {
    %c0_i32 = arith.constant 0 : i32
    %c0_i32_0 = arith.constant 0 : i32
    %c0_i32_1 = arith.constant 0 : i32
    return %c0_i32, %c0_i32_0 : i32, i32
  }
  func.func @transform_6(%arg0: i32) -> (i32, i32) {
    %c0_i32 = arith.constant 0 : i32
    %c0_i32_0 = arith.constant 0 : i32
    %c0_i32_1 = arith.constant 0 : i32
    return %c0_i32, %c0_i32_0 : i32, i32
  }
  func.func @transform_7(%arg0: i32) -> (i32, i32) {
    %c0_i32 = arith.constant 0 : i32
    %c0_i32_0 = arith.constant 0 : i32
    %c0_i32_1 = arith.constant 0 : i32
    return %c0_i32, %c0_i32_0 : i32, i32
  }
  func.func @transform_8(%arg0: i32) -> (i32, i32) {
    %c0_i32 = arith.constant 0 : i32
    %c0_i32_0 = arith.constant 0 : i32
    %c0_i32_1 = arith.constant 0 : i32
    return %c0_i32, %c0_i32_0 : i32, i32
  }
  func.func @transform_9(%arg0: i32) -> (i32, i32) {
    %c0_i32 = arith.constant 0 : i32
    %c0_i32_0 = arith.constant 0 : i32
    return %arg0, %c0_i32 : i32, i32
  }
}

</mosaic_0001>

<llo_original>
// kernel: tpu_custom_call.1
$region0: #{tpu_custom_call.1}
  #allocation0 [shape = 'u32[]', space=smem, size = 0x4, offset = 0x4, fixed_abs, tag = 'smem constant byte address 0x4 - core index']
  #allocation1 [shape = 'u32[144,128]{1,0:T(1,128)}', space=vmem, size = 0x12000, scoped, tag = 'internal scratch']
  %s0 = inlined_call_operand.hbm [shape: f32[16,128], index: 0, kind: input, shape index: {}]
  %s1 = inlined_call_operand.hbm [shape: bf16[128,128], index: 1, kind: input, shape index: {}]
  %s2 = inlined_call_operand.vmem [shape: f32[1,128], index: 2, kind: input, shape index: {}]
  %s3 = inlined_call_operand.hbm [shape: bf16[128,128], index: 3, kind: input, shape index: {}]
  %s4 = inlined_call_operand.vmem [shape: f32[1,128], index: 4, kind: input, shape index: {}]
  %s5 = inlined_call_operand.hbm [shape: bf16[128,128], index: 5, kind: input, shape index: {}]
  %s6 = inlined_call_operand.vmem [shape: f32[1,128], index: 6, kind: input, shape index: {}]
  %s7 = inlined_call_operand.hbm [shape: bf16[128,128], index: 7, kind: input, shape index: {}]
  %s8 = inlined_call_operand.vmem [shape: f32[1,128], index: 8, kind: input, shape index: {}]
  %s9 = inlined_call_operand.hbm [shape: f32[16,128], index: 9, kind: output, shape index: {}]
  %s10 = sld [smem:[#allocation0]]
  $region89: #{tpu_custom_call.1} parent=0
    _
  %s12 = ssub.s32 1, %s10
  %s13 = scalar_select 0, %s12, %s10
  $region1: #{tpu_custom_call.1} parent=0
    #allocation2 [shape = 'u8[8192]{0}', space=vmem, size = 0x2000, scoped, tag = 'input window, operand 0']
    #allocation3 [shape = 's32[2]{0}', space=sflag, size = 0x8, scoped, tag = 'scoped memory for tpu_custom_call.1']
    #allocation4 [shape = 's32[2]{0}', space=sflag, size = 0x8, scoped, tag = 'scoped memory for tpu_custom_call.1']
    #allocation5 [shape = 'u8[32768]{0}', space=vmem, size = 0x8000, scoped, tag = 'input window, operand 1, single buffered']
    #allocation6 [shape = 's32[1]{0}', space=sflag, size = 0x4, scoped, tag = 'scoped memory for tpu_custom_call.1']
    #allocation7 [shape = 'u8[32768]{0}', space=vmem, size = 0x8000, scoped, tag = 'input window, operand 3, single buffered']
    #allocation8 [shape = 'u8[32768]{0}', space=vmem, size = 0x8000, scoped, tag = 'input window, operand 5, single buffered']
    #allocation9 [shape = 's32[1]{0}', space=sflag, size = 0x4, scoped, tag = 'scoped memory for tpu_custom_call.1']
    #allocation10 [shape = 'u8[32768]{0}', space=vmem, size = 0x8000, scoped, tag = 'input window, operand 7, single buffered']
    #allocation11 [shape = 'u8[8192]{0}', space=vmem, size = 0x2000, scoped, tag = 'output window, operand 0']
    %14 = vsyncpa [#allocation3], 0
    %s15 = scalar_lea.sflag [#allocation3], 1
    %16 = vsyncpa %s15, 0
    %17 = vsyncpa [#allocation6], 0
    %18 = vsyncpa [#allocation9], 0
    %19 = vsyncpa [#allocation4], 0
    %s20 = scalar_lea.sflag [#allocation4], 1
    %21 = vsyncpa %s20, 0
    loop: start=0, step=1, limit=4
    $region2: #{tpu_custom_call.1} parent=1 // loop_pre_header
      _
    $region3: #{tpu_custom_call.1} parent=1 // loop_header
      %s23 = sphi 0, %s27
      %p24 = scmp.ge.s32.totalorder %s23, 4
      %s33 = sphi 0, %s35
      %s36 = sphi 0, %s33
      %s37 = sphi 0, %s36
      %s53 = sphi 0, %s37
      %s57 = sphi 0, %s57
      %s59 = sphi 0, %s57
      %s60 = sphi 0, %s59
      %s74 = sphi 0, %s60
      %s78 = sphi 0, %s78
      %s80 = sphi 0, %s78
      %s81 = sphi 0, %s80
      %s95 = sphi 0, %s81
      %s99 = sphi 0, %s99
      %s101 = sphi 0, %s99
      %s102 = sphi 0, %s101
      %s116 = sphi 0, %s102
      %s120 = sphi 0, %s120
      %s122 = sphi 0, %s120
      %s123 = sphi 0, %s122
      %s137 = sphi 0, %s123
      %s141 = sphi 0, %s141
      %s143 = sphi 0, %s141
      %s144 = sphi 0, %s143
      %s158 = sphi 0, %s144
      %s162 = sphi 0, %s162
      %s164 = sphi 0, %s162
      %s165 = sphi 0, %s164
      %s179 = sphi 0, %s165
      %s183 = sphi 0, %s183
      %s185 = sphi 0, %s183
      %s186 = sphi 0, %s185
      %s200 = sphi 0, %s186
      %s204 = sphi 0, %s204
      %s206 = sphi 0, %s204
      %s207 = sphi 0, %s206
      %s221 = sphi 0, %s207
      %s227 = sphi 0, %s229
      %s230 = sphi 0, %s227
      %s231 = sphi 0, %s230
      %s247 = sphi 0, %s231
    $region4: #{tpu_custom_call.1} parent=1 // loop_header_branch
      %26 = sbr.rel (%p24) target = $region8
    $region5: #{tpu_custom_call.1} parent=1 // loop_body
      %s28 = ssub.s32 %s23, 1
      %s29 = ssub.s32 %s23, 2
      %s30 = sadd.s32 %s23, 1
      %s31 = ssub.s32 %s23, %s30
      %p32 = scmp.eq.s32.totalorder %s31, 0
      %s34 = sadd.s32 %s33, 1
      %s35 = scalar_select %p32, %s33, %s34
      %p38 = pneg %p32
      %p39 = scmp.eq.s32.totalorder %s23, 1
      %p40 = por %p38, %p39
      %p41 = scmp.ne.s32.totalorder %s33, %s36
      %p42 = scmp.eq.s32.totalorder %s23, 0
      %p43 = por %p41, %p42
      %p44 = scmp.ne.s32.totalorder %s33, %s36
      %p45 = scmp.eq.s32.totalorder %s28, 1
      %p46 = por %p44, %p45
      %p47 = scmp.ne.s32.totalorder %s36, %s37
      %p48 = scmp.eq.s32.totalorder %s28, 0
      %p49 = por %p47, %p48
      %p50 = scmp.ne.s32.totalorder %s36, %s37
      %p51 = scmp.eq.s32.totalorder %s29, 1
      %p52 = por %p50, %p51
      %p54 = scmp.ne.s32.totalorder %s37, %s53
      %p55 = scmp.eq.s32.totalorder %s29, 0
      %p56 = por %p54, %p55
      %s58 = sadd.s32 %s57, 1
      %p61 = scmp.eq.s32.totalorder %s23, 1
      %p62 = scmp.ne.s32.totalorder %s57, %s59
      %p63 = scmp.eq.s32.totalorder %s23, 0
      %p64 = por %p62, %p63
      %p65 = scmp.ne.s32.totalorder %s57, %s59
      %p66 = scmp.eq.s32.totalorder %s28, 1
      %p67 = por %p65, %p66
      %p68 = scmp.ne.s32.totalorder %s59, %s60
      %p69 = scmp.eq.s32.totalorder %s28, 0
      %p70 = por %p68, %p69
      %p71 = scmp.ne.s32.totalorder %s59, %s60
      %p72 = scmp.eq.s32.totalorder %s29, 1
      %p73 = por %p71, %p72
      %p75 = scmp.ne.s32.totalorder %s60, %s74
      %p76 = scmp.eq.s32.totalorder %s29, 0
      %p77 = por %p75, %p76
      %s79 = sadd.s32 %s78, 1
      %p82 = scmp.eq.s32.totalorder %s23, 1
      %p83 = scmp.ne.s32.totalorder %s78, %s80
      %p84 = scmp.eq.s32.totalorder %s23, 0
      %p85 = por %p83, %p84
      %p86 = scmp.ne.s32.totalorder %s78, %s80
      %p87 = scmp.eq.s32.totalorder %s28, 1
      %p88 = por %p86, %p87
      %p89 = scmp.ne.s32.totalorder %s80, %s81
      %p90 = scmp.eq.s32.totalorder %s28, 0
      %p91 = por %p89, %p90
      %p92 = scmp.ne.s32.totalorder %s80, %s81
      %p93 = scmp.eq.s32.totalorder %s29, 1
      %p94 = por %p92, %p93
      %p96 = scmp.ne.s32.totalorder %s81, %s95
      %p97 = scmp.eq.s32.totalorder %s29, 0
      %p98 = por %p96, %p97
      %s100 = sadd.s32 %s99, 1
      %p103 = scmp.eq.s32.totalorder %s23, 1
      %p104 = scmp.ne.s32.totalorder %s99, %s101
      %p105 = scmp.eq.s32.totalorder %s23, 0
      %p106 = por %p104, %p105
      %p107 = scmp.ne.s32.totalorder %s99, %s101
      %p108 = scmp.eq.s32.totalorder %s28, 1
      %p109 = por %p107, %p108
      %p110 = scmp.ne.s32.totalorder %s101, %s102
      %p111 = scmp.eq.s32.totalorder %s28, 0
      %p112 = por %p110, %p111
      %p113 = scmp.ne.s32.totalorder %s101, %s102
      %p114 = scmp.eq.s32.totalorder %s29, 1
      %p115 = por %p113, %p114
      %p117 = scmp.ne.s32.totalorder %s102, %s116
      %p118 = scmp.eq.s32.totalorder %s29, 0
      %p119 = por %p117, %p118
      %s121 = sadd.s32 %s120, 1
      %p124 = scmp.eq.s32.totalorder %s23, 1
      %p125 = scmp.ne.s32.totalorder %s120, %s122
      %p126 = scmp.eq.s32.totalorder %s23, 0
      %p127 = por %p125, %p126
      %p128 = scmp.ne.s32.totalorder %s120, %s122
      %p129 = scmp.eq.s32.totalorder %s28, 1
      %p130 = por %p128, %p129
      %p131 = scmp.ne.s32.totalorder %s122, %s123
      %p132 = scmp.eq.s32.totalorder %s28, 0
      %p133 = por %p131, %p132
      %p134 = scmp.ne.s32.totalorder %s122, %s123
      %p135 = scmp.eq.s32.totalorder %s29, 1
      %p136 = por %p134, %p135
      %p138 = scmp.ne.s32.totalorder %s123, %s137
      %p139 = scmp.eq.s32.totalorder %s29, 0
      %p140 = por %p138, %p139
      %s142 = sadd.s32 %s141, 1
      %p145 = scmp.eq.s32.totalorder %s23, 1
      %p146 = scmp.ne.s32.totalorder %s141, %s143
      %p147 = scmp.eq.s32.totalorder %s23, 0
      %p148 = por %p146, %p147
      %p149 = scmp.ne.s32.totalorder %s141, %s143
      %p150 = scmp.eq.s32.totalorder %s28, 1
      %p151 = por %p149, %p150
      %p152 = scmp.ne.s32.totalorder %s143, %s144
      %p153 = scmp.eq.s32.totalorder %s28, 0
      %p154 = por %p152, %p153
      %p155 = scmp.ne.s32.totalorder %s143, %s144
      %p156 = scmp.eq.s32.totalorder %s29, 1
      %p157 = por %p155, %p156
      %p159 = scmp.ne.s32.totalorder %s144, %s158
      %p160 = scmp.eq.s32.totalorder %s29, 0
      %p161 = por %p159, %p160
      %s163 = sadd.s32 %s162, 1
      %p166 = scmp.eq.s32.totalorder %s23, 1
      %p167 = scmp.ne.s32.totalorder %s162, %s164
      %p168 = scmp.eq.s32.totalorder %s23, 0
      %p169 = por %p167, %p168
      %p170 = scmp.ne.s32.totalorder %s162, %s164
      %p171 = scmp.eq.s32.totalorder %s28, 1
      %p172 = por %p170, %p171
      %p173 = scmp.ne.s32.totalorder %s164, %s165
      %p174 = scmp.eq.s32.totalorder %s28, 0
      %p175 = por %p173, %p174
      %p176 = scmp.ne.s32.totalorder %s164, %s165
      %p177 = scmp.eq.s32.totalorder %s29, 1
      %p178 = por %p176, %p177
      %p180 = scmp.ne.s32.totalorder %s165, %s179
      %p181 = scmp.eq.s32.totalorder %s29, 0
      %p182 = por %p180, %p181
      %s184 = sadd.s32 %s183, 1
      %p187 = scmp.eq.s32.totalorder %s23, 1
      %p188 = scmp.ne.s32.totalorder %s183, %s185
      %p189 = scmp.eq.s32.totalorder %s23, 0
      %p190 = por %p188, %p189
      %p191 = scmp.ne.s32.totalorder %s183, %s185
      %p192 = scmp.eq.s32.totalorder %s28, 1
      %p193 = por %p191, %p192
      %p194 = scmp.ne.s32.totalorder %s185, %s186
      %p195 = scmp.eq.s32.totalorder %s28, 0
      %p196 = por %p194, %p195
      %p197 = scmp.ne.s32.totalorder %s185, %s186
      %p198 = scmp.eq.s32.totalorder %s29, 1
      %p199 = por %p197, %p198
      %p201 = scmp.ne.s32.totalorder %s186, %s200
      %p202 = scmp.eq.s32.totalorder %s29, 0
      %p203 = por %p201, %p202
      %s205 = sadd.s32 %s204, 1
      %p208 = scmp.eq.s32.totalorder %s23, 1
      %p209 = scmp.ne.s32.totalorder %s204, %s206
      %p210 = scmp.eq.s32.totalorder %s23, 0
      %p211 = por %p209, %p210
      %p212 = scmp.ne.s32.totalorder %s204, %s206
      %p213 = scmp.eq.s32.totalorder %s28, 1
      %p214 = por %p212, %p213
      %p215 = scmp.ne.s32.totalorder %s206, %s207
      %p216 = scmp.eq.s32.totalorder %s28, 0
      %p217 = por %p215, %p216
      %p218 = scmp.ne.s32.totalorder %s206, %s207
      %p219 = scmp.eq.s32.totalorder %s29, 1
      %p220 = por %p218, %p219
      %p222 = scmp.ne.s32.totalorder %s207, %s221
      %p223 = scmp.eq.s32.totalorder %s29, 0
      %p224 = por %p222, %p223
      %s225 = ssub.s32 %s23, %s30
      %p226 = scmp.eq.s32.totalorder %s225, 0
      %s228 = sadd.s32 %s227, 1
      %s229 = scalar_select %p226, %s227, %s228
      %p232 = pneg %p226
      %p233 = scmp.eq.s32.totalorder %s23, 1
      %p234 = por %p232, %p233
      %p235 = scmp.ne.s32.totalorder %s227, %s230
      %p236 = scmp.eq.s32.totalorder %s23, 0
      %p237 = por %p235, %p236
      %p238 = scmp.ne.s32.totalorder %s227, %s230
      %p239 = scmp.eq.s32.totalorder %s28, 1
      %p240 = por %p238, %p239
      %p241 = scmp.ne.s32.totalorder %s230, %s231
      %p242 = scmp.eq.s32.totalorder %s28, 0
      %p243 = por %p241, %p242
      %p244 = scmp.ne.s32.totalorder %s230, %s231
      %p245 = scmp.eq.s32.totalorder %s29, 1
      %p246 = por %p244, %p245
      %p248 = scmp.ne.s32.totalorder %s231, %s247
      %p249 = scmp.eq.s32.totalorder %s29, 0
      %p250 = por %p248, %p249
      %p251 = scmp.le.s32.totalorder 1, %s23
      %p252 = scmp.lt.s32.totalorder %s23, 3
      %p253 = pnand %p251, %p252
      %p254 = pneg %p253
      // Predicated region
      $region9: #{tpu_custom_call.1} parent=5 // pred_check
        _
      $region10: #{tpu_custom_call.1} parent=5 // pred_check_branch
        %256 = sbr.rel (%p253) target = $region12
      $region11: #{tpu_custom_call.1} parent=5 // pred_region
        %s257 = ssub.s32 %s23, 1
        // Predicated region
        $region13: #{tpu_custom_call.1} parent=11 // pred_check
          %p258 = pneg %p70
        $region14: #{tpu_custom_call.1} parent=11 // pred_check_branch
          %260 = sbr.rel (%p258) target = $region16
        $region15: #{tpu_custom_call.1} parent=11 // pred_region
          %s262 = ssub.s32 1024, 1024
          %263 = vsyncadd [#allocation6], %s262
          %s264 = sshll.u32 [#allocation5], 4
          %s265 = int_to_ptr.vmem [resolvable:$true] %s264
          %270 = dma.hbm_to_vmem [thread:$0]  %s1, 1024, %s265, [#allocation6], 64, 64, 4
        $region16: #{tpu_custom_call.1} parent=11 // pred_fallthru
          _
        // Predicated region
        $region17: #{tpu_custom_call.1} parent=11 // pred_check
          %p271 = pneg %p91
        $region18: #{tpu_custom_call.1} parent=11 // pred_check_branch
          %273 = sbr.rel (%p271) target = $region20
        $region19: #{tpu_custom_call.1} parent=11 // pred_region
          _
        $region20: #{tpu_custom_call.1} parent=11 // pred_fallthru
          _
        // Predicated region
        $region21: #{tpu_custom_call.1} parent=11 // pred_check
          %p274 = pneg %p112
        $region22: #{tpu_custom_call.1} parent=11 // pred_check_branch
          %276 = sbr.rel (%p274) target = $region24
        $region23: #{tpu_custom_call.1} parent=11 // pred_region
          %s278 = ssub.s32 1024, 1024
          %279 = vsyncadd [#allocation6], %s278
          %s280 = sshll.u32 [#allocation7], 4
          %s281 = int_to_ptr.vmem [resolvable:$true] %s280
          %286 = dma.hbm_to_vmem [thread:$0]  %s3, 1024, %s281, [#allocation6], 64, 64, 4
        $region24: #{tpu_custom_call.1} parent=11 // pred_fallthru
          _
        // Predicated region
        $region25: #{tpu_custom_call.1} parent=11 // pred_check
          %p287 = pneg %p133
        $region26: #{tpu_custom_call.1} parent=11 // pred_check_branch
          %289 = sbr.rel (%p287) target = $region28
        $region27: #{tpu_custom_call.1} parent=11 // pred_region
          _
        $region28: #{tpu_custom_call.1} parent=11 // pred_fallthru
          _
        // Predicated region
        $region29: #{tpu_custom_call.1} parent=11 // pred_check
          %p290 = pneg %p154
        $region30: #{tpu_custom_call.1} parent=11 // pred_check_branch
          %292 = sbr.rel (%p290) target = $region32
        $region31: #{tpu_custom_call.1} parent=11 // pred_region
          %s294 = ssub.s32 1024, 1024
          %295 = vsyncadd [#allocation9], %s294
          %s296 = sshll.u32 [#allocation8], 4
          %s297 = int_to_ptr.vmem [resolvable:$true] %s296
          %302 = dma.hbm_to_vmem [thread:$0]  %s5, 1024, %s297, [#allocation9], 64, 64, 4
        $region32: #{tpu_custom_call.1} parent=11 // pred_fallthru
          _
        // Predicated region
        $region33: #{tpu_custom_call.1} parent=11 // pred_check
          %p303 = pneg %p175
        $region34: #{tpu_custom_call.1} parent=11 // pred_check_branch
          %305 = sbr.rel (%p303) target = $region36
        $region35: #{tpu_custom_call.1} parent=11 // pred_region
          _
        $region36: #{tpu_custom_call.1} parent=11 // pred_fallthru
          _
        // Predicated region
        $region37: #{tpu_custom_call.1} parent=11 // pred_check
          %p306 = pneg %p196
        $region38: #{tpu_custom_call.1} parent=11 // pred_check_branch
          %308 = sbr.rel (%p306) target = $region40
        $region39: #{tpu_custom_call.1} parent=11 // pred_region
          %s310 = ssub.s32 1024, 1024
          %311 = vsyncadd [#allocation9], %s310
          %s312 = sshll.u32 [#allocation10], 4
          %s313 = int_to_ptr.vmem [resolvable:$true] %s312
          %318 = dma.hbm_to_vmem [thread:$0]  %s7, 1024, %s313, [#allocation9], 64, 64, 4
        $region40: #{tpu_custom_call.1} parent=11 // pred_fallthru
          _
        // Predicated region
        $region41: #{tpu_custom_call.1} parent=11 // pred_check
          %p319 = pneg %p217
        $region42: #{tpu_custom_call.1} parent=11 // pred_check_branch
          %321 = sbr.rel (%p319) target = $region44
        $region43: #{tpu_custom_call.1} parent=11 // pred_region
          _
        $region44: #{tpu_custom_call.1} parent=11 // pred_fallthru
          _
      $region12: #{tpu_custom_call.1} parent=5 // pred_fallthru
        _
      %p322 = scmp.lt.s32.totalorder %s23, 2
      // Predicated region
      $region45: #{tpu_custom_call.1} parent=5 // pred_check
        %p323 = pneg %p322
      $region46: #{tpu_custom_call.1} parent=5 // pred_check_branch
        %325 = sbr.rel (%p323) target = $region48
      $region47: #{tpu_custom_call.1} parent=5 // pred_region
        // Predicated region
        $region49: #{tpu_custom_call.1} parent=47 // pred_check
          %p326 = pneg %p43
        $region50: #{tpu_custom_call.1} parent=47 // pred_check_branch
          %328 = sbr.rel (%p326) target = $region52
        $region51: #{tpu_custom_call.1} parent=47 // pred_region
          %s329 = sand.u32 %s33, 1
          %s330 = scalar_lea.sflag [#allocation3], %s329
          %s331 = sand.u32 %s33, 1
          %s332 = smul.addr %s331, 8
          %s333 = scalar_lea.vmem [#allocation2], %s332
          %s335 = ssub.s32 128, 128
          %336 = vsyncadd %s330, %s335
          %s337 = smul.addr %s23, 128
          %s338 = scalar_lea.hbm %s0, %s337
          %s340 = sshll.u32 %s333, 4
          %s341 = int_to_ptr.vmem [resolvable:$true] %s340
          %343 = dma.hbm_to_vmem [thread:$0]  %s338, 128, %s341, %s330
        $region52: #{tpu_custom_call.1} parent=47 // pred_fallthru
          _
      $region48: #{tpu_custom_call.1} parent=5 // pred_fallthru
        _
      %p344 = scmp.le.s32.totalorder 1, %s23
      %p345 = scmp.lt.s32.totalorder %s23, 3
      %p346 = pnand %p344, %p345
      %p347 = pneg %p346
      // Predicated region
      $region53: #{tpu_custom_call.1} parent=5 // pred_check
        _
      $region54: #{tpu_custom_call.1} parent=5 // pred_check_branch
        %349 = sbr.rel (%p346) target = $region56
      $region55: #{tpu_custom_call.1} parent=5 // pred_region
        %s350 = ssub.s32 %s23, 1
        %s351 = sand.u32 %s36, 1
        %s352 = scalar_lea.sflag [#allocation3], %s351
        %s353 = sand.u32 %s36, 1
        %s354 = smul.addr %s353, 8
        %s355 = scalar_lea.vmem [#allocation2], %s354
        // Predicated region
        $region57: #{tpu_custom_call.1} parent=55 // pred_check
          %p356 = pneg %p49
        $region58: #{tpu_custom_call.1} parent=55 // pred_check_branch
          %358 = sbr.rel (%p356) target = $region60
        $region59: #{tpu_custom_call.1} parent=55 // pred_region
          %359 = dma.done %s352, 128
        $region60: #{tpu_custom_call.1} parent=55 // pred_fallthru
          _
        // Predicated region
        $region61: #{tpu_custom_call.1} parent=55 // pred_check
          %p360 = pneg %p70
        $region62: #{tpu_custom_call.1} parent=55 // pred_check_branch
          %362 = sbr.rel (%p360) target = $region64
        $region63: #{tpu_custom_call.1} parent=55 // pred_region
          %363 = dma.done [#allocation6], 1024
        $region64: #{tpu_custom_call.1} parent=55 // pred_fallthru
          _
        // Predicated region
        $region65: #{tpu_custom_call.1} parent=55 // pred_check
          %p364 = pneg %p112
        $region66: #{tpu_custom_call.1} parent=55 // pred_check_branch
          %366 = sbr.rel (%p364) target = $region68
        $region67: #{tpu_custom_call.1} parent=55 // pred_region
          %367 = dma.done [#allocation6], 1024
        $region68: #{tpu_custom_call.1} parent=55 // pred_fallthru
          _
        // Predicated region
        $region69: #{tpu_custom_call.1} parent=55 // pred_check
          %p368 = pneg %p154
        $region70: #{tpu_custom_call.1} parent=55 // pred_check_branch
          %370 = sbr.rel (%p368) target = $region72
        $region71: #{tpu_custom_call.1} parent=55 // pred_region
          %371 = dma.done [#allocation9], 1024
        $region72: #{tpu_custom_call.1} parent=55 // pred_fallthru
          _
        // Predicated region
        $region73: #{tpu_custom_call.1} parent=55 // pred_check
          %p372 = pneg %p196
        $region74: #{tpu_custom_call.1} parent=55 // pred_check_branch
          %374 = sbr.rel (%p372) target = $region76
        $region75: #{tpu_custom_call.1} parent=55 // pred_region
          %375 = dma.done [#allocation9], 1024
        $region76: #{tpu_custom_call.1} parent=55 // pred_fallthru
          _
        %s376 = sand.u32 %s36, 1
        %s377 = scalar_lea.sflag [#allocation3], %s376
        %s378 = sand.u32 %s36, 1
        %s379 = smul.addr %s378, 8
        %s380 = scalar_lea.vmem [#allocation2], %s379
        %p381 = pneg %p49
        %p382 = pneg %p46
        %p383 = pneg %p70
        %p384 = pneg %p67
        %p385 = pneg %p91
        %p386 = pneg %p88
        %p387 = pneg %p112
        %p388 = pneg %p109
        %p389 = pneg %p133
        %p390 = pneg %p130
        %p391 = pneg %p154
        %p392 = pneg %p151
        %p393 = pneg %p175
        %p394 = pneg %p172
        %p395 = pneg %p196
        %p396 = pneg %p193
        %p397 = pneg %p217
        %p398 = pneg %p214
        %p399 = pneg %p243
        %p400 = pneg %p240
        %s401 = sand.u32 %s230, 1
        %s402 = scalar_lea.sflag [#allocation4], %s401
        %s403 = sand.u32 %s230, 1
        %s404 = smul.addr %s403, 8
        %s405 = scalar_lea.vmem [#allocation11], %s404
        %v407 = vld [vmem:[%s355] sm:$0xff]
        %v408 = vpack.c.bf16 %v407, %v407
        %v409 = vld [vmem:[#allocation5] sm:$0xf]
        %v410 = vld [vmem:[#allocation5 + $0x4] sm:$0xf]
        %v411 = vld [vmem:[#allocation5 + $0x8] sm:$0xf]
        %v412 = vld [vmem:[#allocation5 + $0xc] sm:$0xf]
        %v413 = vld [vmem:[#allocation5 + $0x10] sm:$0xf]
        %v414 = vld [vmem:[#allocation5 + $0x14] sm:$0xf]
        %v415 = vld [vmem:[#allocation5 + $0x18] sm:$0xf]
        %v416 = vld [vmem:[#allocation5 + $0x1c] sm:$0xf]
        %v417 = vld [vmem:[#allocation5 + $0x20] sm:$0xf]
        %v418 = vld [vmem:[#allocation5 + $0x24] sm:$0xf]
        %v419 = vld [vmem:[#allocation5 + $0x28] sm:$0xf]
        %v420 = vld [vmem:[#allocation5 + $0x2c] sm:$0xf]
        %v421 = vld [vmem:[#allocation5 + $0x30] sm:$0xf]
        %v422 = vld [vmem:[#allocation5 + $0x34] sm:$0xf]
        %v423 = vld [vmem:[#allocation5 + $0x38] sm:$0xf]
        %v424 = vld [vmem:[#allocation5 + $0x3c] sm:$0xf]
        %v425 = vld [vmem:[%s2] sm:$0x1]
        %v427 = vlaneseq
        %v428 = vshrl.u32 %v427, 7
        %v429 = vsub.s32 0, %v428
        %v430 = vrot.slane %v425, %v429
        %v448 = vunpack.c.l.b16 %v409
        %v449 = vunpack.c.l.b16 %v410
        %v450 = vunpack.c.l.b16 %v411
        %v451 = vunpack.c.l.b16 %v412
        %v452 = vunpack.c.l.b16 %v413
        %v453 = vunpack.c.l.b16 %v414
        %v454 = vunpack.c.l.b16 %v415
        %v455 = vunpack.c.l.b16 %v416
        %v456 = vunpack.c.l.b16 %v417
        %v457 = vunpack.c.l.b16 %v418
        %v458 = vunpack.c.l.b16 %v419
        %v459 = vunpack.c.l.b16 %v420
        %v460 = vunpack.c.l.b16 %v421
        %v461 = vunpack.c.l.b16 %v422
        %v462 = vunpack.c.l.b16 %v423
        %v463 = vunpack.c.l.b16 %v424
        %v464 = vpack.c.b16 %v449, %v448
        %v465 = vpack.c.b16 %v451, %v450
        %v466 = vpack.c.b16 %v453, %v452
        %v467 = vpack.c.b16 %v455, %v454
        %v468 = vpack.c.b16 %v457, %v456
        %v469 = vpack.c.b16 %v459, %v458
        %v470 = vpack.c.b16 %v461, %v460
        %v471 = vpack.c.b16 %v463, %v462
        %480 = vmatprep.subr.bf16.mxu0 0
        %481 = vmatpush1.bf16.msra.mxu0 %v464
        %482 = vmatprep.subr.bf16.mxu0 0
        %483 = vmatpush1.bf16.msra.mxu0 %v465
        %484 = vmatprep.subr.bf16.mxu0 0
        %485 = vmatpush1.bf16.msra.mxu0 %v466
        %486 = vmatprep.subr.bf16.mxu0 0
        %487 = vmatpush1.bf16.msra.mxu0 %v467
        %488 = vmatprep.subr.bf16.mxu0 0
        %489 = vmatpush1.bf16.msra.mxu0 %v468
        %490 = vmatprep.subr.bf16.mxu0 0
        %491 = vmatpush1.bf16.msra.mxu0 %v469
        %492 = vmatprep.subr.bf16.mxu0 0
        %493 = vmatpush1.bf16.msra.mxu0 %v470
        %494 = vmatprep.subr.bf16.mxu0 0
        %495 = vmatpush1.bf16.msra.mxu0 %v471
        %496 = vmatprep.subr.bf16.mxu0 0
        %497 = vmatpush1.bf16.msra.mxu0 0
        %498 = vmatprep.subr.bf16.mxu0 0
        %499 = vmatpush1.bf16.msra.mxu0 0
        %500 = vmatprep.subr.bf16.mxu0 0
        %501 = vmatpush1.bf16.msra.mxu0 0
        %502 = vmatprep.subr.bf16.mxu0 0
        %503 = vmatpush1.bf16.msra.mxu0 0
        %504 = vmatprep.subr.bf16.mxu0 0
        %505 = vmatpush1.bf16.msra.mxu0 0
        %506 = vmatprep.subr.bf16.mxu0 0
        %507 = vmatpush1.bf16.msra.mxu0 0
        %508 = vmatprep.subr.bf16.mxu0 0
        %509 = vmatpush1.bf16.msra.mxu0 0
        %510 = vmatprep.subr.bf16.mxu0 0
        %511 = vmatpush1.bf16.msra.mxu0 0
        %512 = vmatprep.mubr.bf16.mxu0 0
        %513 = vmatmul.mubr.bf16.gmra.mrb[0].mxu0 %v408
        %v514 = vpop.f32.mrb[0].mxu0
        %v515 = vadd.f32 %v430, %v514
        %v516 = vpop.f32.mrb[0].mxu0
        %v517 = vpop.f32.mrb[0].mxu0
        %v518 = vpop.f32.mrb[0].mxu0
        %519 = vdwg.mxu0
        %v520 = vmax.f32 %v515, 0.0
        %v521 = vpack.c.bf16 %v520, %v520
        %v522 = vld [vmem:[#allocation7] sm:$0xf]
        %v523 = vld [vmem:[#allocation7 + $0x4] sm:$0xf]
        %v524 = vld [vmem:[#allocation7 + $0x8] sm:$0xf]
        %v525 = vld [vmem:[#allocation7 + $0xc] sm:$0xf]
        %v526 = vld [vmem:[#allocation7 + $0x10] sm:$0xf]
        %v527 = vld [vmem:[#allocation7 + $0x14] sm:$0xf]
        %v528 = vld [vmem:[#allocation7 + $0x18] sm:$0xf]
        %v529 = vld [vmem:[#allocation7 + $0x1c] sm:$0xf]
        %v530 = vld [vmem:[#allocation7 + $0x20] sm:$0xf]
        %v531 = vld [vmem:[#allocation7 + $0x24] sm:$0xf]
        %v532 = vld [vmem:[#allocation7 + $0x28] sm:$0xf]
        %v533 = vld [vmem:[#allocation7 + $0x2c] sm:$0xf]
        %v534 = vld [vmem:[#allocation7 + $0x30] sm:$0xf]
        %v535 = vld [vmem:[#allocation7 + $0x34] sm:$0xf]
        %v536 = vld [vmem:[#allocation7 + $0x38] sm:$0xf]
        %v537 = vld [vmem:[#allocation7 + $0x3c] sm:$0xf]
        %v538 = vld [vmem:[%s4] sm:$0x1]
        %v540 = vlaneseq
        %v541 = vshrl.u32 %v540, 7
        %v542 = vsub.s32 0, %v541
        %v543 = vrot.slane %v538, %v542
        %v561 = vunpack.c.l.b16 %v522
        %v562 = vunpack.c.l.b16 %v523
        %v563 = vunpack.c.l.b16 %v524
        %v564 = vunpack.c.l.b16 %v525
        %v565 = vunpack.c.l.b16 %v526
        %v566 = vunpack.c.l.b16 %v527
        %v567 = vunpack.c.l.b16 %v528
        %v568 = vunpack.c.l.b16 %v529
        %v569 = vunpack.c.l.b16 %v530
        %v570 = vunpack.c.l.b16 %v531
        %v571 = vunpack.c.l.b16 %v532
        %v572 = vunpack.c.l.b16 %v533
        %v573 = vunpack.c.l.b16 %v534
        %v574 = vunpack.c.l.b16 %v535
        %v575 = vunpack.c.l.b16 %v536
        %v576 = vunpack.c.l.b16 %v537
        %v577 = vpack.c.b16 %v562, %v561
        %v578 = vpack.c.b16 %v564, %v563
        %v579 = vpack.c.b16 %v566, %v565
        %v580 = vpack.c.b16 %v568, %v567
        %v581 = vpack.c.b16 %v570, %v569
        %v582 = vpack.c.b16 %v572, %v571
        %v583 = vpack.c.b16 %v574, %v573
        %v584 = vpack.c.b16 %v576, %v575
        %593 = vmatprep.subr.bf16.mxu0 0
        %594 = vmatpush1.bf16.msra.mxu0 %v577
        %595 = vmatprep.subr.bf16.mxu0 0
        %596 = vmatpush1.bf16.msra.mxu0 %v578
        %597 = vmatprep.subr.bf16.mxu0 0
        %598 = vmatpush1.bf16.msra.mxu0 %v579
        %599 = vmatprep.subr.bf16.mxu0 0
        %600 = vmatpush1.bf16.msra.mxu0 %v580
        %601 = vmatprep.subr.bf16.mxu0 0
        %602 = vmatpush1.bf16.msra.mxu0 %v581
        %603 = vmatprep.subr.bf16.mxu0 0
        %604 = vmatpush1.bf16.msra.mxu0 %v582
        %605 = vmatprep.subr.bf16.mxu0 0
        %606 = vmatpush1.bf16.msra.mxu0 %v583
        %607 = vmatprep.subr.bf16.mxu0 0
        %608 = vmatpush1.bf16.msra.mxu0 %v584
        %609 = vmatprep.subr.bf16.mxu0 0
        %610 = vmatpush1.bf16.msra.mxu0 0
        %611 = vmatprep.subr.bf16.mxu0 0
        %612 = vmatpush1.bf16.msra.mxu0 0
        %613 = vmatprep.subr.bf16.mxu0 0
        %614 = vmatpush1.bf16.msra.mxu0 0
        %615 = vmatprep.subr.bf16.mxu0 0
        %616 = vmatpush1.bf16.msra.mxu0 0
        %617 = vmatprep.subr.bf16.mxu0 0
        %618 = vmatpush1.bf16.msra.mxu0 0
        %619 = vmatprep.subr.bf16.mxu0 0
        %620 = vmatpush1.bf16.msra.mxu0 0
        %621 = vmatprep.subr.bf16.mxu0 0
        %622 = vmatpush1.bf16.msra.mxu0 0
        %623 = vmatprep.subr.bf16.mxu0 0
        %624 = vmatpush1.bf16.msra.mxu0 0
        %625 = vmatprep.mubr.bf16.mxu0 0
        %626 = vmatmul.mubr.bf16.gmra.mrb[0].mxu0 %v521
        %v627 = vpop.f32.mrb[0].mxu0
        %v628 = vadd.f32 %v543, %v627
        %v629 = vpop.f32.mrb[0].mxu0
        %v630 = vpop.f32.mrb[0].mxu0
        %v631 = vpop.f32.mrb[0].mxu0
        %632 = vdwg.mxu0
        %v633 = vmax.f32 %v628, 0.0
        %v634 = vpack.c.bf16 %v633, %v633
        %v635 = vld [vmem:[#allocation8] sm:$0xf]
        %v636 = vld [vmem:[#allocation8 + $0x4] sm:$0xf]
        %v637 = vld [vmem:[#allocation8 + $0x8] sm:$0xf]
        %v638 = vld [vmem:[#allocation8 + $0xc] sm:$0xf]
        %v639 = vld [vmem:[#allocation8 + $0x10] sm:$0xf]
        %v640 = vld [vmem:[#allocation8 + $0x14] sm:$0xf]
        %v641 = vld [vmem:[#allocation8 + $0x18] sm:$0xf]
        %v642 = vld [vmem:[#allocation8 + $0x1c] sm:$0xf]
        %v643 = vld [vmem:[#allocation8 + $0x20] sm:$0xf]
        %v644 = vld [vmem:[#allocation8 + $0x24] sm:$0xf]
        %v645 = vld [vmem:[#allocation8 + $0x28] sm:$0xf]
        %v646 = vld [vmem:[#allocation8 + $0x2c] sm:$0xf]
        %v647 = vld [vmem:[#allocation8 + $0x30] sm:$0xf]
        %v648 = vld [vmem:[#allocation8 + $0x34] sm:$0xf]
        %v649 = vld [vmem:[#allocation8 + $0x38] sm:$0xf]
        %v650 = vld [vmem:[#allocation8 + $0x3c] sm:$0xf]
        %v651 = vld [vmem:[%s6] sm:$0x1]
        %v653 = vlaneseq
        %v654 = vshrl.u32 %v653, 7
        %v655 = vsub.s32 0, %v654
        %v656 = vrot.slane %v651, %v655
        %v674 = vunpack.c.l.b16 %v635
        %v675 = vunpack.c.l.b16 %v636
        %v676 = vunpack.c.l.b16 %v637
        %v677 = vunpack.c.l.b16 %v638
        %v678 = vunpack.c.l.b16 %v639
        %v679 = vunpack.c.l.b16 %v640
        %v680 = vunpack.c.l.b16 %v641
        %v681 = vunpack.c.l.b16 %v642
        %v682 = vunpack.c.l.b16 %v643
        %v683 = vunpack.c.l.b16 %v644
        %v684 = vunpack.c.l.b16 %v645
        %v685 = vunpack.c.l.b16 %v646
        %v686 = vunpack.c.l.b16 %v647
        %v687 = vunpack.c.l.b16 %v648
        %v688 = vunpack.c.l.b16 %v649
        %v689 = vunpack.c.l.b16 %v650
        %v690 = vpack.c.b16 %v675, %v674
        %v691 = vpack.c.b16 %v677, %v676
        %v692 = vpack.c.b16 %v679, %v678
        %v693 = vpack.c.b16 %v681, %v680
        %v694 = vpack.c.b16 %v683, %v682
        %v695 = vpack.c.b16 %v685, %v684
        %v696 = vpack.c.b16 %v687, %v686
        %v697 = vpack.c.b16 %v689, %v688
        %706 = vmatprep.subr.bf16.mxu0 0
        %707 = vmatpush1.bf16.msra.mxu0 %v690
        %708 = vmatprep.subr.bf16.mxu0 0
        %709 = vmatpush1.bf16.msra.mxu0 %v691
        %710 = vmatprep.subr.bf16.mxu0 0
        %711 = vmatpush1.bf16.msra.mxu0 %v692
        %712 = vmatprep.subr.bf16.mxu0 0
        %713 = vmatpush1.bf16.msra.mxu0 %v693
        %714 = vmatprep.subr.bf16.mxu0 0
        %715 = vmatpush1.bf16.msra.mxu0 %v694
        %716 = vmatprep.subr.bf16.mxu0 0
        %717 = vmatpush1.bf16.msra.mxu0 %v695
        %718 = vmatprep.subr.bf16.mxu0 0
        %719 = vmatpush1.bf16.msra.mxu0 %v696
        %720 = vmatprep.subr.bf16.mxu0 0
        %721 = vmatpush1.bf16.msra.mxu0 %v697
        %722 = vmatprep.subr.bf16.mxu0 0
        %723 = vmatpush1.bf16.msra.mxu0 0
        %724 = vmatprep.subr.bf16.mxu0 0
        %725 = vmatpush1.bf16.msra.mxu0 0
        %726 = vmatprep.subr.bf16.mxu0 0
        %727 = vmatpush1.bf16.msra.mxu0 0
        %728 = vmatprep.subr.bf16.mxu0 0
        %729 = vmatpush1.bf16.msra.mxu0 0
        %730 = vmatprep.subr.bf16.mxu0 0
        %731 = vmatpush1.bf16.msra.mxu0 0
        %732 = vmatprep.subr.bf16.mxu0 0
        %733 = vmatpush1.bf16.msra.mxu0 0
        %734 = vmatprep.subr.bf16.mxu0 0
        %735 = vmatpush1.bf16.msra.mxu0 0
        %736 = vmatprep.subr.bf16.mxu0 0
        %737 = vmatpush1.bf16.msra.mxu0 0
        %738 = vmatprep.mubr.bf16.mxu0 0
        %739 = vmatmul.mubr.bf16.gmra.mrb[0].mxu0 %v634
        %v740 = vpop.f32.mrb[0].mxu0
        %v741 = vadd.f32 %v656, %v740
        %v742 = vpop.f32.mrb[0].mxu0
        %v743 = vpop.f32.mrb[0].mxu0
        %v744 = vpop.f32.mrb[0].mxu0
        %745 = vdwg.mxu0
        %v746 = vmax.f32 %v741, 0.0
        %v747 = vpack.c.bf16 %v746, %v746
        %v748 = vld [vmem:[#allocation10] sm:$0xf]
        %v749 = vld [vmem:[#allocation10 + $0x4] sm:$0xf]
        %v750 = vld [vmem:[#allocation10 + $0x8] sm:$0xf]
        %v751 = vld [vmem:[#allocation10 + $0xc] sm:$0xf]
        %v752 = vld [vmem:[#allocation10 + $0x10] sm:$0xf]
        %v753 = vld [vmem:[#allocation10 + $0x14] sm:$0xf]
        %v754 = vld [vmem:[#allocation10 + $0x18] sm:$0xf]
        %v755 = vld [vmem:[#allocation10 + $0x1c] sm:$0xf]
        %v756 = vld [vmem:[#allocation10 + $0x20] sm:$0xf]
        %v757 = vld [vmem:[#allocation10 + $0x24] sm:$0xf]
        %v758 = vld [vmem:[#allocation10 + $0x28] sm:$0xf]
        %v759 = vld [vmem:[#allocation10 + $0x2c] sm:$0xf]
        %v760 = vld [vmem:[#allocation10 + $0x30] sm:$0xf]
        %v761 = vld [vmem:[#allocation10 + $0x34] sm:$0xf]
        %v762 = vld [vmem:[#allocation10 + $0x38] sm:$0xf]
        %v763 = vld [vmem:[#allocation10 + $0x3c] sm:$0xf]
        %v764 = vld [vmem:[%s8] sm:$0x1]
        %v766 = vlaneseq
        %v767 = vshrl.u32 %v766, 7
        %v768 = vsub.s32 0, %v767
        %v769 = vrot.slane %v764, %v768
        %v787 = vunpack.c.l.b16 %v748
        %v788 = vunpack.c.l.b16 %v749
        %v789 = vunpack.c.l.b16 %v750
        %v790 = vunpack.c.l.b16 %v751
        %v791 = vunpack.c.l.b16 %v752
        %v792 = vunpack.c.l.b16 %v753
        %v793 = vunpack.c.l.b16 %v754
        %v794 = vunpack.c.l.b16 %v755
        %v795 = vunpack.c.l.b16 %v756
        %v796 = vunpack.c.l.b16 %v757
        %v797 = vunpack.c.l.b16 %v758
        %v798 = vunpack.c.l.b16 %v759
        %v799 = vunpack.c.l.b16 %v760
        %v800 = vunpack.c.l.b16 %v761
        %v801 = vunpack.c.l.b16 %v762
        %v802 = vunpack.c.l.b16 %v763
        %v803 = vpack.c.b16 %v788, %v787
        %v804 = vpack.c.b16 %v790, %v789
        %v805 = vpack.c.b16 %v792, %v791
        %v806 = vpack.c.b16 %v794, %v793
        %v807 = vpack.c.b16 %v796, %v795
        %v808 = vpack.c.b16 %v798, %v797
        %v809 = vpack.c.b16 %v800, %v799
        %v810 = vpack.c.b16 %v802, %v801
        %819 = vmatprep.subr.bf16.mxu0 0
        %820 = vmatpush1.bf16.msra.mxu0 %v803
        %821 = vmatprep.subr.bf16.mxu0 0
        %822 = vmatpush1.bf16.msra.mxu0 %v804
        %823 = vmatprep.subr.bf16.mxu0 0
        %824 = vmatpush1.bf16.msra.mxu0 %v805
        %825 = vmatprep.subr.bf16.mxu0 0
        %826 = vmatpush1.bf16.msra.mxu0 %v806
        %827 = vmatprep.subr.bf16.mxu0 0
        %828 = vmatpush1.bf16.msra.mxu0 %v807
        %829 = vmatprep.subr.bf16.mxu0 0
        %830 = vmatpush1.bf16.msra.mxu0 %v808
        %831 = vmatprep.subr.bf16.mxu0 0
        %832 = vmatpush1.bf16.msra.mxu0 %v809
        %833 = vmatprep.subr.bf16.mxu0 0
        %834 = vmatpush1.bf16.msra.mxu0 %v810
        %835 = vmatprep.subr.bf16.mxu0 0
        %836 = vmatpush1.bf16.msra.mxu0 0
        %837 = vmatprep.subr.bf16.mxu0 0
        %838 = vmatpush1.bf16.msra.mxu0 0
        %839 = vmatprep.subr.bf16.mxu0 0
        %840 = vmatpush1.bf16.msra.mxu0 0
        %841 = vmatprep.subr.bf16.mxu0 0
        %842 = vmatpush1.bf16.msra.mxu0 0
        %843 = vmatprep.subr.bf16.mxu0 0
        %844 = vmatpush1.bf16.msra.mxu0 0
        %845 = vmatprep.subr.bf16.mxu0 0
        %846 = vmatpush1.bf16.msra.mxu0 0
        %847 = vmatprep.subr.bf16.mxu0 0
        %848 = vmatpush1.bf16.msra.mxu0 0
        %849 = vmatprep.subr.bf16.mxu0 0
        %850 = vmatpush1.bf16.msra.mxu0 0
        %851 = vmatprep.mubr.bf16.mxu0 0
        %852 = vmatmul.mubr.bf16.gmra.mrb[0].mxu0 %v747
        %v853 = vpop.f32.mrb[0].mxu0
        %v854 = vadd.f32 %v769, %v853
        %v855 = vpop.f32.mrb[0].mxu0
        %v856 = vpop.f32.mrb[0].mxu0
        %v857 = vpop.f32.mrb[0].mxu0
        %858 = vdwg.mxu0
        %v859 = vmax.f32 %v854, 0.0
        %860 = vst [vmem:[%s405] sm:$0xff] %v859
        %s861 = sand.u32 %s230, 1
        %s862 = scalar_lea.sflag [#allocation4], %s861
        %s863 = sand.u32 %s230, 1
        %s864 = smul.addr %s863, 8
        %s865 = scalar_lea.vmem [#allocation11], %s864
        // Predicated region
        $region77: #{tpu_custom_call.1} parent=55 // pred_check
          %p866 = pneg %p240
        $region78: #{tpu_custom_call.1} parent=55 // pred_check_branch
          %868 = sbr.rel (%p866) target = $region80
        $region79: #{tpu_custom_call.1} parent=55 // pred_region
          %s870 = ssub.s32 128, 128
          %871 = vsyncadd %s862, %s870
          %s872 = smul.addr %s28, 128
          %s873 = scalar_lea.hbm %s9, %s872
          %s875 = sshll.u32 %s865, 4
          %s876 = int_to_ptr.vmem [resolvable:$true] %s875
          %878 = dma.vmem_to_hbm [thread:$0]  %s876, 128, %s873, %s862
        $region80: #{tpu_custom_call.1} parent=55 // pred_fallthru
          _
      $region56: #{tpu_custom_call.1} parent=5 // pred_fallthru
        _
      %p879 = scmp.le.s32.totalorder 2, %s23
      // Predicated region
      $region81: #{tpu_custom_call.1} parent=5 // pred_check
        %p880 = pneg %p879
      $region82: #{tpu_custom_call.1} parent=5 // pred_check_branch
        %882 = sbr.rel (%p880) target = $region84
      $region83: #{tpu_custom_call.1} parent=5 // pred_region
        %s883 = ssub.s32 %s23, 2
        // Predicated region
        $region85: #{tpu_custom_call.1} parent=83 // pred_check
          %p884 = pneg %p246
        $region86: #{tpu_custom_call.1} parent=83 // pred_check_branch
          %886 = sbr.rel (%p884) target = $region88
        $region87: #{tpu_custom_call.1} parent=83 // pred_region
          %s887 = sand.u32 %s231, 1
          %s888 = scalar_lea.sflag [#allocation4], %s887
          %s889 = sand.u32 %s231, 1
          %s890 = smul.addr %s889, 8
          %s891 = scalar_lea.vmem [#allocation11], %s890
          %892 = dma.done %s888, 128
        $region88: #{tpu_custom_call.1} parent=83 // pred_fallthru
          _
      $region84: #{tpu_custom_call.1} parent=5 // pred_fallthru
        _
    $region6: #{tpu_custom_call.1} parent=1 // loop_footer
      %s27 = sadd.s32 1, %s23
    $region7: #{tpu_custom_call.1} parent=1 // loop_footer_branch
      %22 = sbr.rel target = $region3
    $region8: #{tpu_custom_call.1} parent=1 // loop_exit
      _
    %893 = vsyncpa [#allocation3], 1
    %s894 = scalar_lea.sflag [#allocation3], 1
    %895 = vsyncpa %s894, 1
    %896 = vsyncpa [#allocation6], 1
    %897 = vsyncpa [#allocation9], 1
    %898 = vsyncpa [#allocation4], 1
    %s899 = scalar_lea.sflag [#allocation4], 1
    %900 = vsyncpa %s899, 1

// kernel: tpu_custom_call.1
$region0: #{tpu_custom_call.1}
  #allocation0 [shape = 'u32[]', space=smem, size = 0x4, offset = 0x4, fixed_abs, tag = 'smem constant byte address 0x4 - core index']
  #allocation1 [shape = 'u32[144,128]{1,0:T(1,128)}', space=vmem, size = 0x12000, scoped, tag = 'internal scratch']
  %s0 = inlined_call_operand.hbm [shape: f32[16,128], index: 0, kind: input, shape index: {}]
  %s1 = inlined_call_operand.hbm [shape: bf16[128,128], index: 1, kind: input, shape index: {}]
  %s2 = inlined_call_operand.vmem [shape: f32[1,128], index: 2, kind: input, shape index: {}]
  %s3 = inlined_call_operand.hbm [shape: bf16[128,128], index: 3, kind: input, shape index: {}]
  %s4 = inlined_call_operand.vmem [shape: f32[1,128], index: 4, kind: input, shape index: {}]
  %s5 = inlined_call_operand.hbm [shape: bf16[128,128], index: 5, kind: input, shape index: {}]
  %s6 = inlined_call_operand.vmem [shape: f32[1,128], index: 6, kind: input, shape index: {}]
  %s7 = inlined_call_operand.hbm [shape: bf16[128,128], index: 7, kind: input, shape index: {}]
  %s8 = inlined_call_operand.vmem [shape: f32[1,128], index: 8, kind: input, shape index: {}]
  %s9 = inlined_call_operand.hbm [shape: f32[16,128], index: 9, kind: output, shape index: {}]
  %s10 = sld [smem:[#allocation0]]
  $region89: #{tpu_custom_call.1} parent=0
    _
  %s12 = ssub.s32 1, %s10
  %s13 = scalar_select 0, %s12, %s10
  $region1: #{tpu_custom_call.1} parent=0
    #allocation2 [shape = 'u8[8192]{0}', space=vmem, size = 0x2000, scoped, tag = 'input window, operand 0']
    #allocation3 [shape = 's32[2]{0}', space=sflag, size = 0x8, scoped, tag = 'scoped memory for tpu_custom_call.1']
    #allocation4 [shape = 's32[2]{0}', space=sflag, size = 0x8, scoped, tag = 'scoped memory for tpu_custom_call.1']
    #allocation5 [shape = 'u8[32768]{0}', space=vmem, size = 0x8000, scoped, tag = 'input window, operand 1, single buffered']
    #allocation6 [shape = 's32[1]{0}', space=sflag, size = 0x4, scoped, tag = 'scoped memory for tpu_custom_call.1']
    #allocation7 [shape = 'u8[32768]{0}', space=vmem, size = 0x8000, scoped, tag = 'input window, operand 3, single buffered']
    #allocation8 [shape = 'u8[32768]{0}', space=vmem, size = 0x8000, scoped, tag = 'input window, operand 5, single buffered']
    #allocation9 [shape = 's32[1]{0}', space=sflag, size = 0x4, scoped, tag = 'scoped memory for tpu_custom_call.1']
    #allocation10 [shape = 'u8[32768]{0}', space=vmem, size = 0x8000, scoped, tag = 'input window, operand 7, single buffered']
    #allocation11 [shape = 'u8[8192]{0}', space=vmem, size = 0x2000, scoped, tag = 'output window, operand 0']
    %14 = vsyncpa [#allocation3], 0
    %s15 = scalar_lea.sflag [#allocation3], 1
    %16 = vsyncpa %s15, 0
    %17 = vsyncpa [#allocation6], 0
    %18 = vsyncpa [#allocation9], 0
    %19 = vsyncpa [#allocation4], 0
    %s20 = scalar_lea.sflag [#allocation4], 1
    %21 = vsyncpa %s20, 0
    loop: start=0, step=1, limit=4
    $region2: #{tpu_custom_call.1} parent=1 // loop_pre_header
      _
    $region3: #{tpu_custom_call.1} parent=1 // loop_header
      %s23 = sphi 0, %s27
      %p24 = scmp.ge.s32.totalorder %s23, 4
      %s33 = sphi 0, %s35
      %s36 = sphi 0, %s33
      %s37 = sphi 0, %s36
      %s53 = sphi 0, %s37
      %s57 = sphi 0, %s57
      %s59 = sphi 0, %s57
      %s60 = sphi 0, %s59
      %s74 = sphi 0, %s60
      %s78 = sphi 0, %s78
      %s80 = sphi 0, %s78
      %s81 = sphi 0, %s80
      %s95 = sphi 0, %s81
      %s99 = sphi 0, %s99
      %s101 = sphi 0, %s99
      %s102 = sphi 0, %s101
      %s116 = sphi 0, %s102
      %s120 = sphi 0, %s120
      %s122 = sphi 0, %s120
      %s123 = sphi 0, %s122
      %s137 = sphi 0, %s123
      %s141 = sphi 0, %s141
      %s143 = sphi 0, %s141
      %s144 = sphi 0, %s143
      %s158 = sphi 0, %s144
      %s162 = sphi 0, %s162
      %s164 = sphi 0, %s162
      %s165 = sphi 0, %s164
      %s179 = sphi 0, %s165
      %s183 = sphi 0, %s183
      %s185 = sphi 0, %s183
      %s186 = sphi 0, %s185
      %s200 = sphi 0, %s186
      %s204 = sphi 0, %s204
      %s206 = sphi 0, %s204
      %s207 = sphi 0, %s206
      %s221 = sphi 0, %s207
      %s227 = sphi 0, %s229
      %s230 = sphi 0, %s227
      %s231 = sphi 0, %s230
      %s247 = sphi 0, %s231
    $region4: #{tpu_custom_call.1} parent=1 // loop_header_branch
      %26 = sbr.rel (%p24) target = $region8
    $region5: #{tpu_custom_call.1} parent=1 // loop_body
      %s28 = ssub.s32 %s23, 1
      %s29 = ssub.s32 %s23, 2
      %s30 = sadd.s32 %s23, 1
      %s31 = ssub.s32 %s23, %s30
      %p32 = scmp.eq.s32.totalorder %s31, 0
      %s34 = sadd.s32 %s33, 1
      %s35 = scalar_select %p32, %s33, %s34
      %p38 = pneg %p32
      %p39 = scmp.eq.s32.totalorder %s23, 1
      %p40 = por %p38, %p39
      %p41 = scmp.ne.s32.totalorder %s33, %s36
      %p42 = scmp.eq.s32.totalorder %s23, 0
      %p43 = por %p41, %p42
      %p44 = scmp.ne.s32.totalorder %s33, %s36
      %p45 = scmp.eq.s32.totalorder %s28, 1
      %p46 = por %p44, %p45
      %p47 = scmp.ne.s32.totalorder %s36, %s37
      %p48 = scmp.eq.s32.totalorder %s28, 0
      %p49 = por %p47, %p48
      %p50 = scmp.ne.s32.totalorder %s36, %s37
      %p51 = scmp.eq.s32.totalorder %s29, 1
      %p52 = por %p50, %p51
      %p54 = scmp.ne.s32.totalorder %s37, %s53
      %p55 = scmp.eq.s32.totalorder %s29, 0
      %p56 = por %p54, %p55
      %s58 = sadd.s32 %s57, 1
      %p61 = scmp.eq.s32.totalorder %s23, 1
      %p62 = scmp.ne.s32.totalorder %s57, %s59
      %p63 = scmp.eq.s32.totalorder %s23, 0
      %p64 = por %p62, %p63
      %p65 = scmp.ne.s32.totalorder %s57, %s59
      %p66 = scmp.eq.s32.totalorder %s28, 1
      %p67 = por %p65, %p66
      %p68 = scmp.ne.s32.totalorder %s59, %s60
      %p69 = scmp.eq.s32.totalorder %s28, 0
      %p70 = por %p68, %p69
      %p71 = scmp.ne.s32.totalorder %s59, %s60
      %p72 = scmp.eq.s32.totalorder %s29, 1
      %p73 = por %p71, %p72
      %p75 = scmp.ne.s32.totalorder %s60, %s74
      %p76 = scmp.eq.s32.totalorder %s29, 0
      %p77 = por %p75, %p76
      %s79 = sadd.s32 %s78, 1
      %p82 = scmp.eq.s32.totalorder %s23, 1
      %p83 = scmp.ne.s32.totalorder %s78, %s80
      %p84 = scmp.eq.s32.totalorder %s23, 0
      %p85 = por %p83, %p84
      %p86 = scmp.ne.s32.totalorder %s78, %s80
      %p87 = scmp.eq.s32.totalorder %s28, 1
      %p88 = por %p86, %p87
      %p89 = scmp.ne.s32.totalorder %s80, %s81
      %p90 = scmp.eq.s32.totalorder %s28, 0
      %p91 = por %p89, %p90
      %p92 = scmp.ne.s32.totalorder %s80, %s81
      %p93 = scmp.eq.s32.totalorder %s29, 1
      %p94 = por %p92, %p93
      %p96 = scmp.ne.s32.totalorder %s81, %s95
      %p97 = scmp.eq.s32.totalorder %s29, 0
      %p98 = por %p96, %p97
      %s100 = sadd.s32 %s99, 1
      %p103 = scmp.eq.s32.totalorder %s23, 1
      %p104 = scmp.ne.s32.totalorder %s99, %s101
      %p105 = scmp.eq.s32.totalorder %s23, 0
      %p106 = por %p104, %p105
      %p107 = scmp.ne.s32.totalorder %s99, %s101
      %p108 = scmp.eq.s32.totalorder %s28, 1
      %p109 = por %p107, %p108
      %p110 = scmp.ne.s32.totalorder %s101, %s102
      %p111 = scmp.eq.s32.totalorder %s28, 0
      %p112 = por %p110, %p111
      %p113 = scmp.ne.s32.totalorder %s101, %s102
      %p114 = scmp.eq.s32.totalorder %s29, 1
      %p115 = por %p113, %p114
      %p117 = scmp.ne.s32.totalorder %s102, %s116
      %p118 = scmp.eq.s32.totalorder %s29, 0
      %p119 = por %p117, %p118
      %s121 = sadd.s32 %s120, 1
      %p124 = scmp.eq.s32.totalorder %s23, 1
      %p125 = scmp.ne.s32.totalorder %s120, %s122
      %p126 = scmp.eq.s32.totalorder %s23, 0
      %p127 = por %p125, %p126
      %p128 = scmp.ne.s32.totalorder %s120, %s122
      %p129 = scmp.eq.s32.totalorder %s28, 1
      %p130 = por %p128, %p129
      %p131 = scmp.ne.s32.totalorder %s122, %s123
      %p132 = scmp.eq.s32.totalorder %s28, 0
      %p133 = por %p131, %p132
      %p134 = scmp.ne.s32.totalorder %s122, %s123
      %p135 = scmp.eq.s32.totalorder %s29, 1
      %p136 = por %p134, %p135
      %p138 = scmp.ne.s32.totalorder %s123, %s137
      %p139 = scmp.eq.s32.totalorder %s29, 0
      %p140 = por %p138, %p139
      %s142 = sadd.s32 %s141, 1
      %p145 = scmp.eq.s32.totalorder %s23, 1
      %p146 = scmp.ne.s32.totalorder %s141, %s143
      %p147 = scmp.eq.s32.totalorder %s23, 0
      %p148 = por %p146, %p147
      %p149 = scmp.ne.s32.totalorder %s141, %s143
      %p150 = scmp.eq.s32.totalorder %s28, 1
      %p151 = por %p149, %p150
      %p152 = scmp.ne.s32.totalorder %s143, %s144
      %p153 = scmp.eq.s32.totalorder %s28, 0
      %p154 = por %p152, %p153
      %p155 = scmp.ne.s32.totalorder %s143, %s144
      %p156 = scmp.eq.s32.totalorder %s29, 1
      %p157 = por %p155, %p156
      %p159 = scmp.ne.s32.totalorder %s144, %s158
      %p160 = scmp.eq.s32.totalorder %s29, 0
      %p161 = por %p159, %p160
      %s163 = sadd.s32 %s162, 1
      %p166 = scmp.eq.s32.totalorder %s23, 1
      %p167 = scmp.ne.s32.totalorder %s162, %s164
      %p168 = scmp.eq.s32.totalorder %s23, 0
      %p169 = por %p167, %p168
      %p170 = scmp.ne.s32.totalorder %s162, %s164
      %p171 = scmp.eq.s32.totalorder %s28, 1
      %p172 = por %p170, %p171
      %p173 = scmp.ne.s32.totalorder %s164, %s165
      %p174 = scmp.eq.s32.totalorder %s28, 0
      %p175 = por %p173, %p174
      %p176 = scmp.ne.s32.totalorder %s164, %s165
      %p177 = scmp.eq.s32.totalorder %s29, 1
      %p178 = por %p176, %p177
      %p180 = scmp.ne.s32.totalorder %s165, %s179
      %p181 = scmp.eq.s32.totalorder %s29, 0
      %p182 = por %p180, %p181
      %s184 = sadd.s32 %s183, 1
      %p187 = scmp.eq.s32.totalorder %s23, 1
      %p188 = scmp.ne.s32.totalorder %s183, %s185
      %p189 = scmp.eq.s32.totalorder %s23, 0
      %p190 = por %p188, %p189
      %p191 = scmp.ne.s32.totalorder %s183, %s185
      %p192 = scmp.eq.s32.totalorder %s28, 1
      %p193 = por %p191, %p192
      %p194 = scmp.ne.s32.totalorder %s185, %s186
      %p195 = scmp.eq.s32.totalorder %s28, 0
      %p196 = por %p194, %p195
      %p197 = scmp.ne.s32.totalorder %s185, %s186
      %p198 = scmp.eq.s32.totalorder %s29, 1
      %p199 = por %p197, %p198
      %p201 = scmp.ne.s32.totalorder %s186, %s200
      %p202 = scmp.eq.s32.totalorder %s29, 0
      %p203 = por %p201, %p202
      %s205 = sadd.s32 %s204, 1
      %p208 = scmp.eq.s32.totalorder %s23, 1
      %p209 = scmp.ne.s32.totalorder %s204, %s206
      %p210 = scmp.eq.s32.totalorder %s23, 0
      %p211 = por %p209, %p210
      %p212 = scmp.ne.s32.totalorder %s204, %s206
      %p213 = scmp.eq.s32.totalorder %s28, 1
      %p214 = por %p212, %p213
      %p215 = scmp.ne.s32.totalorder %s206, %s207
      %p216 = scmp.eq.s32.totalorder %s28, 0
      %p217 = por %p215, %p216
      %p218 = scmp.ne.s32.totalorder %s206, %s207
      %p219 = scmp.eq.s32.totalorder %s29, 1
      %p220 = por %p218, %p219
      %p222 = scmp.ne.s32.totalorder %s207, %s221
      %p223 = scmp.eq.s32.totalorder %s29, 0
      %p224 = por %p222, %p223
      %s225 = ssub.s32 %s23, %s30
      %p226 = scmp.eq.s32.totalorder %s225, 0
      %s228 = sadd.s32 %s227, 1
      %s229 = scalar_select %p226, %s227, %s228
      %p232 = pneg %p226
      %p233 = scmp.eq.s32.totalorder %s23, 1
      %p234 = por %p232, %p233
      %p235 = scmp.ne.s32.totalorder %s227, %s230
      %p236 = scmp.eq.s32.totalorder %s23, 0
      %p237 = por %p235, %p236
      %p238 = scmp.ne.s32.totalorder %s227, %s230
      %p239 = scmp.eq.s32.totalorder %s28, 1
      %p240 = por %p238, %p239
      %p241 = scmp.ne.s32.totalorder %s230, %s231
      %p242 = scmp.eq.s32.totalorder %s28, 0
      %p243 = por %p241, %p242
      %p244 = scmp.ne.s32.totalorder %s230, %s231
      %p245 = scmp.eq.s32.totalorder %s29, 1
      %p246 = por %p244, %p245
      %p248 = scmp.ne.s32.totalorder %s231, %s247
      %p249 = scmp.eq.s32.totalorder %s29, 0
      %p250 = por %p248, %p249
      %p251 = scmp.le.s32.totalorder 1, %s23
      %p252 = scmp.lt.s32.totalorder %s23, 3
      %p253 = pnand %p251, %p252
      %p254 = pneg %p253
      // Predicated region
      $region9: #{tpu_custom_call.1} parent=5 // pred_check
        _
      $region10: #{tpu_custom_call.1} parent=5 // pred_check_branch
        %256 = sbr.rel (%p253) target = $region12
      $region11: #{tpu_custom_call.1} parent=5 // pred_region
        %s257 = ssub.s32 %s23, 1
        // Predicated region
        $region13: #{tpu_custom_call.1} parent=11 // pred_check
          %p258 = pneg %p70
        $region14: #{tpu_custom_call.1} parent=11 // pred_check_branch
          %260 = sbr.rel (%p258) target = $region16
        $region15: #{tpu_custom_call.1} parent=11 // pred_region
          %s262 = ssub.s32 1024, 1024
          %263 = vsyncadd [#allocation6], %s262
          %s264 = sshll.u32 [#allocation5], 4
          %s265 = int_to_ptr.vmem [resolvable:$true] %s264
          %270 = dma.hbm_to_vmem [thread:$0]  %s1, 1024, %s265, [#allocation6], 64, 64, 4
        $region16: #{tpu_custom_call.1} parent=11 // pred_fallthru
          _
        // Predicated region
        $region17: #{tpu_custom_call.1} parent=11 // pred_check
          %p271 = pneg %p91
        $region18: #{tpu_custom_call.1} parent=11 // pred_check_branch
          %273 = sbr.rel (%p271) target = $region20
        $region19: #{tpu_custom_call.1} parent=11 // pred_region
          _
        $region20: #{tpu_custom_call.1} parent=11 // pred_fallthru
          _
        // Predicated region
        $region21: #{tpu_custom_call.1} parent=11 // pred_check
          %p274 = pneg %p112
        $region22: #{tpu_custom_call.1} parent=11 // pred_check_branch
          %276 = sbr.rel (%p274) target = $region24
        $region23: #{tpu_custom_call.1} parent=11 // pred_region
          %s278 = ssub.s32 1024, 1024
          %279 = vsyncadd [#allocation6], %s278
          %s280 = sshll.u32 [#allocation7], 4
          %s281 = int_to_ptr.vmem [resolvable:$true] %s280
          %286 = dma.hbm_to_vmem [thread:$0]  %s3, 1024, %s281, [#allocation6], 64, 64, 4
        $region24: #{tpu_custom_call.1} parent=11 // pred_fallthru
          _
        // Predicated region
        $region25: #{tpu_custom_call.1} parent=11 // pred_check
          %p287 = pneg %p133
        $region26: #{tpu_custom_call.1} parent=11 // pred_check_branch
          %289 = sbr.rel (%p287) target = $region28
        $region27: #{tpu_custom_call.1} parent=11 // pred_region
          _
        $region28: #{tpu_custom_call.1} parent=11 // pred_fallthru
          _
        // Predicated region
        $region29: #{tpu_custom_call.1} parent=11 // pred_check
          %p290 = pneg %p154
        $region30: #{tpu_custom_call.1} parent=11 // pred_check_branch
          %292 = sbr.rel (%p290) target = $region32
        $region31: #{tpu_custom_call.1} parent=11 // pred_region
          %s294 = ssub.s32 1024, 1024
          %295 = vsyncadd [#allocation9], %s294
          %s296 = sshll.u32 [#allocation8], 4
          %s297 = int_to_ptr.vmem [resolvable:$true] %s296
          %302 = dma.hbm_to_vmem [thread:$0]  %s5, 1024, %s297, [#allocation9], 64, 64, 4
        $region32: #{tpu_custom_call.1} parent=11 // pred_fallthru
          _
        // Predicated region
        $region33: #{tpu_custom_call.1} parent=11 // pred_check
          %p303 = pneg %p175
        $region34: #{tpu_custom_call.1} parent=11 // pred_check_branch
          %305 = sbr.rel (%p303) target = $region36
        $region35: #{tpu_custom_call.1} parent=11 // pred_region
          _
        $region36: #{tpu_custom_call.1} parent=11 // pred_fallthru
          _
        // Predicated region
        $region37: #{tpu_custom_call.1} parent=11 // pred_check
          %p306 = pneg %p196
        $region38: #{tpu_custom_call.1} parent=11 // pred_check_branch
          %308 = sbr.rel (%p306) target = $region40
        $region39: #{tpu_custom_call.1} parent=11 // pred_region
          %s310 = ssub.s32 1024, 1024
          %311 = vsyncadd [#allocation9], %s310
          %s312 = sshll.u32 [#allocation10], 4
          %s313 = int_to_ptr.vmem [resolvable:$true] %s312
          %318 = dma.hbm_to_vmem [thread:$0]  %s7, 1024, %s313, [#allocation9], 64, 64, 4
        $region40: #{tpu_custom_call.1} parent=11 // pred_fallthru
          _
        // Predicated region
        $region41: #{tpu_custom_call.1} parent=11 // pred_check
          %p319 = pneg %p217
        $region42: #{tpu_custom_call.1} parent=11 // pred_check_branch
          %321 = sbr.rel (%p319) target = $region44
        $region43: #{tpu_custom_call.1} parent=11 // pred_region
          _
        $region44: #{tpu_custom_call.1} parent=11 // pred_fallthru
          _
      $region12: #{tpu_custom_call.1} parent=5 // pred_fallthru
        _
      %p322 = scmp.lt.s32.totalorder %s23, 2
      // Predicated region
      $region45: #{tpu_custom_call.1} parent=5 // pred_check
        %p323 = pneg %p322
      $region46: #{tpu_custom_call.1} parent=5 // pred_check_branch
        %325 = sbr.rel (%p323) target = $region48
      $region47: #{tpu_custom_call.1} parent=5 // pred_region
        // Predicated region
        $region49: #{tpu_custom_call.1} parent=47 // pred_check
          %p326 = pneg %p43
        $region50: #{tpu_custom_call.1} parent=47 // pred_check_branch
          %328 = sbr.rel (%p326) target = $region52
        $region51: #{tpu_custom_call.1} parent=47 // pred_region
          %s329 = sand.u32 %s33, 1
          %s330 = scalar_lea.sflag [#allocation3], %s329
          %s331 = sand.u32 %s33, 1
          %s332 = smul.addr %s331, 8
          %s333 = scalar_lea.vmem [#allocation2], %s332
          %s335 = ssub.s32 128, 128
          %336 = vsyncadd %s330, %s335
          %s337 = smul.addr %s23, 128
          %s338 = scalar_lea.hbm %s0, %s337
          %s340 = sshll.u32 %s333, 4
          %s341 = int_to_ptr.vmem [resolvable:$true] %s340
          %343 = dma.hbm_to_vmem [thread:$0]  %s338, 128, %s341, %s330
        $region52: #{tpu_custom_call.1} parent=47 // pred_fallthru
          _
      $region48: #{tpu_custom_call.1} parent=5 // pred_fallthru
        _
      %p344 = scmp.le.s32.totalorder 1, %s23
      %p345 = scmp.lt.s32.totalorder %s23, 3
      %p346 = pnand %p344, %p345
      %p347 = pneg %p346
      // Predicated region
      $region53: #{tpu_custom_call.1} parent=5 // pred_check
        _
      $region54: #{tpu_custom_call.1} parent=5 // pred_check_branch
        %349 = sbr.rel (%p346) target = $region56
      $region55: #{tpu_custom_call.1} parent=5 // pred_region
        %s350 = ssub.s32 %s23, 1
        %s351 = sand.u32 %s36, 1
        %s352 = scalar_lea.sflag [#allocation3], %s351
        %s353 = sand.u32 %s36, 1
        %s354 = smul.addr %s353, 8
        %s355 = scalar_lea.vmem [#allocation2], %s354
        // Predicated region
        $region57: #{tpu_custom_call.1} parent=55 // pred_check
          %p356 = pneg %p49
        $region58: #{tpu_custom_call.1} parent=55 // pred_check_branch
          %358 = sbr.rel (%p356) target = $region60
        $region59: #{tpu_custom_call.1} parent=55 // pred_region
          %359 = dma.done %s352, 128
        $region60: #{tpu_custom_call.1} parent=55 // pred_fallthru
          _
        // Predicated region
        $region61: #{tpu_custom_call.1} parent=55 // pred_check
          %p360 = pneg %p70
        $region62: #{tpu_custom_call.1} parent=55 // pred_check_branch
          %362 = sbr.rel (%p360) target = $region64
        $region63: #{tpu_custom_call.1} parent=55 // pred_region
          %363 = dma.done [#allocation6], 1024
        $region64: #{tpu_custom_call.1} parent=55 // pred_fallthru
          _
        // Predicated region
        $region65: #{tpu_custom_call.1} parent=55 // pred_check
          %p364 = pneg %p112
        $region66: #{tpu_custom_call.1} parent=55 // pred_check_branch
          %366 = sbr.rel (%p364) target = $region68
        $region67: #{tpu_custom_call.1} parent=55 // pred_region
          %367 = dma.done [#allocation6], 1024
        $region68: #{tpu_custom_call.1} parent=55 // pred_fallthru
          _
        // Predicated region
        $region69: #{tpu_custom_call.1} parent=55 // pred_check
          %p368 = pneg %p154
        $region70: #{tpu_custom_call.1} parent=55 // pred_check_branch
          %370 = sbr.rel (%p368) target = $region72
        $region71: #{tpu_custom_call.1} parent=55 // pred_region
          %371 = dma.done [#allocation9], 1024
        $region72: #{tpu_custom_call.1} parent=55 // pred_fallthru
          _
        // Predicated region
        $region73: #{tpu_custom_call.1} parent=55 // pred_check
          %p372 = pneg %p196
        $region74: #{tpu_custom_call.1} parent=55 // pred_check_branch
          %374 = sbr.rel (%p372) target = $region76
        $region75: #{tpu_custom_call.1} parent=55 // pred_region
          %375 = dma.done [#allocation9], 1024
        $region76: #{tpu_custom_call.1} parent=55 // pred_fallthru
          _
        %s376 = sand.u32 %s36, 1
        %s377 = scalar_lea.sflag [#allocation3], %s376
        %s378 = sand.u32 %s36, 1
        %s379 = smul.addr %s378, 8
        %s380 = scalar_lea.vmem [#allocation2], %s379
        %p381 = pneg %p49
        %p382 = pneg %p46
        %p383 = pneg %p70
        %p384 = pneg %p67
        %p385 = pneg %p91
        %p386 = pneg %p88
        %p387 = pneg %p112
        %p388 = pneg %p109
        %p389 = pneg %p133
        %p390 = pneg %p130
        %p391 = pneg %p154
        %p392 = pneg %p151
        %p393 = pneg %p175
        %p394 = pneg %p172
        %p395 = pneg %p196
        %p396 = pneg %p193
        %p397 = pneg %p217
        %p398 = pneg %p214
        %p399 = pneg %p243
        %p400 = pneg %p240
        %s401 = sand.u32 %s230, 1
        %s402 = scalar_lea.sflag [#allocation4], %s401
        %s403 = sand.u32 %s230, 1
        %s404 = smul.addr %s403, 8
        %s405 = scalar_lea.vmem [#allocation11], %s404
        %v407 = vld [vmem:[%s355] sm:$0xff]
        %v408 = vpack.c.bf16 %v407, %v407
        %v409 = vld [vmem:[#allocation5] sm:$0xf]
        %v410 = vld [vmem:[#allocation5 + $0x4] sm:$0xf]
        %v411 = vld [vmem:[#allocation5 + $0x8] sm:$0xf]
        %v412 = vld [vmem:[#allocation5 + $0xc] sm:$0xf]
        %v413 = vld [vmem:[#allocation5 + $0x10] sm:$0xf]
        %v414 = vld [vmem:[#allocation5 + $0x14] sm:$0xf]
        %v415 = vld [vmem:[#allocation5 + $0x18] sm:$0xf]
        %v416 = vld [vmem:[#allocation5 + $0x1c] sm:$0xf]
        %v417 = vld [vmem:[#allocation5 + $0x20] sm:$0xf]
        %v418 = vld [vmem:[#allocation5 + $0x24] sm:$0xf]
        %v419 = vld [vmem:[#allocation5 + $0x28] sm:$0xf]
        %v420 = vld [vmem:[#allocation5 + $0x2c] sm:$0xf]
        %v421 = vld [vmem:[#allocation5 + $0x30] sm:$0xf]
        %v422 = vld [vmem:[#allocation5 + $0x34] sm:$0xf]
        %v423 = vld [vmem:[#allocation5 + $0x38] sm:$0xf]
        %v424 = vld [vmem:[#allocation5 + $0x3c] sm:$0xf]
        %v425 = vld [vmem:[%s2] sm:$0x1]
        %v427 = vlaneseq
        %v428 = vshrl.u32 %v427, 7
        %v429 = vsub.s32 0, %v428
        %v430 = vrot.slane %v425, %v429
        %v448 = vunpack.c.l.b16 %v409
        %v449 = vunpack.c.l.b16 %v410
        %v450 = vunpack.c.l.b16 %v411
        %v451 = vunpack.c.l.b16 %v412
        %v452 = vunpack.c.l.b16 %v413
        %v453 = vunpack.c.l.b16 %v414
        %v454 = vunpack.c.l.b16 %v415
        %v455 = vunpack.c.l.b16 %v416
        %v456 = vunpack.c.l.b16 %v417
        %v457 = vunpack.c.l.b16 %v418
        %v458 = vunpack.c.l.b16 %v419
        %v459 = vunpack.c.l.b16 %v420
        %v460 = vunpack.c.l.b16 %v421
        %v461 = vunpack.c.l.b16 %v422
        %v462 = vunpack.c.l.b16 %v423
        %v463 = vunpack.c.l.b16 %v424
        %v464 = vpack.c.b16 %v449, %v448
        %v465 = vpack.c.b16 %v451, %v450
        %v466 = vpack.c.b16 %v453, %v452
        %v467 = vpack.c.b16 %v455, %v454
        %v468 = vpack.c.b16 %v457, %v456
        %v469 = vpack.c.b16 %v459, %v458
        %v470 = vpack.c.b16 %v461, %v460
        %v471 = vpack.c.b16 %v463, %v462
        %480 = vmatprep.subr.bf16.mxu0 0
        %481 = vmatpush1.bf16.msra.mxu0 %v464
        %482 = vmatprep.subr.bf16.mxu0 0
        %483 = vmatpush1.bf16.msra.mxu0 %v465
        %484 = vmatprep.subr.bf16.mxu0 0
        %485 = vmatpush1.bf16.msra.mxu0 %v466
        %486 = vmatprep.subr.bf16.mxu0 0
        %487 = vmatpush1.bf16.msra.mxu0 %v467
        %488 = vmatprep.subr.bf16.mxu0 0
        %489 = vmatpush1.bf16.msra.mxu0 %v468
        %490 = vmatprep.subr.bf16.mxu0 0
        %491 = vmatpush1.bf16.msra.mxu0 %v469
        %492 = vmatprep.subr.bf16.mxu0 0
        %493 = vmatpush1.bf16.msra.mxu0 %v470
        %494 = vmatprep.subr.bf16.mxu0 0
        %495 = vmatpush1.bf16.msra.mxu0 %v471
        %496 = vmatprep.subr.bf16.mxu0 0
        %497 = vmatpush1.bf16.msra.mxu0 0
        %498 = vmatprep.subr.bf16.mxu0 0
        %499 = vmatpush1.bf16.msra.mxu0 0
        %500 = vmatprep.subr.bf16.mxu0 0
        %501 = vmatpush1.bf16.msra.mxu0 0
        %502 = vmatprep.subr.bf16.mxu0 0
        %503 = vmatpush1.bf16.msra.mxu0 0
        %504 = vmatprep.subr.bf16.mxu0 0
        %505 = vmatpush1.bf16.msra.mxu0 0
        %506 = vmatprep.subr.bf16.mxu0 0
        %507 = vmatpush1.bf16.msra.mxu0 0
        %508 = vmatprep.subr.bf16.mxu0 0
        %509 = vmatpush1.bf16.msra.mxu0 0
        %510 = vmatprep.subr.bf16.mxu0 0
        %511 = vmatpush1.bf16.msra.mxu0 0
        %512 = vmatprep.mubr.bf16.mxu0 0
        %513 = vmatmul.mubr.bf16.gmra.mrb[0].mxu0 %v408
        %v514 = vpop.f32.mrb[0].mxu0
        %v515 = vadd.f32 %v430, %v514
        %v516 = vpop.f32.mrb[0].mxu0
        %v517 = vpop.f32.mrb[0].mxu0
        %v518 = vpop.f32.mrb[0].mxu0
        %519 = vdwg.mxu0
        %v520 = vmax.f32 %v515, 0.0
        %v521 = vpack.c.bf16 %v520, %v520
        %v522 = vld [vmem:[#allocation7] sm:$0xf]
        %v523 = vld [vmem:[#allocation7 + $0x4] sm:$0xf]
        %v524 = vld [vmem:[#allocation7 + $0x8] sm:$0xf]
        %v525 = vld [vmem:[#allocation7 + $0xc] sm:$0xf]
        %v526 = vld [vmem:[#allocation7 + $0x10] sm:$0xf]
        %v527 = vld [vmem:[#allocation7 + $0x14] sm:$0xf]
        %v528 = vld [vmem:[#allocation7 + $0x18] sm:$0xf]
        %v529 = vld [vmem:[#allocation7 + $0x1c] sm:$0xf]
        %v530 = vld [vmem:[#allocation7 + $0x20] sm:$0xf]
        %v531 = vld [vmem:[#allocation7 + $0x24] sm:$0xf]
        %v532 = vld [vmem:[#allocation7 + $0x28] sm:$0xf]
        %v533 = vld [vmem:[#allocation7 + $0x2c] sm:$0xf]
        %v534 = vld [vmem:[#allocation7 + $0x30] sm:$0xf]
        %v535 = vld [vmem:[#allocation7 + $0x34] sm:$0xf]
        %v536 = vld [vmem:[#allocation7 + $0x38] sm:$0xf]
        %v537 = vld [vmem:[#allocation7 + $0x3c] sm:$0xf]
        %v538 = vld [vmem:[%s4] sm:$0x1]
        %v540 = vlaneseq
        %v541 = vshrl.u32 %v540, 7
        %v542 = vsub.s32 0, %v541
        %v543 = vrot.slane %v538, %v542
        %v561 = vunpack.c.l.b16 %v522
        %v562 = vunpack.c.l.b16 %v523
        %v563 = vunpack.c.l.b16 %v524
        %v564 = vunpack.c.l.b16 %v525
        %v565 = vunpack.c.l.b16 %v526
        %v566 = vunpack.c.l.b16 %v527
        %v567 = vunpack.c.l.b16 %v528
        %v568 = vunpack.c.l.b16 %v529
        %v569 = vunpack.c.l.b16 %v530
        %v570 = vunpack.c.l.b16 %v531
        %v571 = vunpack.c.l.b16 %v532
        %v572 = vunpack.c.l.b16 %v533
        %v573 = vunpack.c.l.b16 %v534
        %v574 = vunpack.c.l.b16 %v535
        %v575 = vunpack.c.l.b16 %v536
        %v576 = vunpack.c.l.b16 %v537
        %v577 = vpack.c.b16 %v562, %v561
        %v578 = vpack.c.b16 %v564, %v563
        %v579 = vpack.c.b16 %v566, %v565
        %v580 = vpack.c.b16 %v568, %v567
        %v581 = vpack.c.b16 %v570, %v569
        %v582 = vpack.c.b16 %v572, %v571
        %v583 = vpack.c.b16 %v574, %v573
        %v584 = vpack.c.b16 %v576, %v575
        %593 = vmatprep.subr.bf16.mxu0 0
        %594 = vmatpush1.bf16.msra.mxu0 %v577
        %595 = vmatprep.subr.bf16.mxu0 0
        %596 = vmatpush1.bf16.msra.mxu0 %v578
        %597 = vmatprep.subr.bf16.mxu0 0
        %598 = vmatpush1.bf16.msra.mxu0 %v579
        %599 = vmatprep.subr.bf16.mxu0 0
        %600 = vmatpush1.bf16.msra.mxu0 %v580
        %601 = vmatprep.subr.bf16.mxu0 0
        %602 = vmatpush1.bf16.msra.mxu0 %v581
        %603 = vmatprep.subr.bf16.mxu0 0
        %604 = vmatpush1.bf16.msra.mxu0 %v582
        %605 = vmatprep.subr.bf16.mxu0 0
        %606 = vmatpush1.bf16.msra.mxu0 %v583
        %607 = vmatprep.subr.bf16.mxu0 0
        %608 = vmatpush1.bf16.msra.mxu0 %v584
        %609 = vmatprep.subr.bf16.mxu0 0
        %610 = vmatpush1.bf16.msra.mxu0 0
        %611 = vmatprep.subr.bf16.mxu0 0
        %612 = vmatpush1.bf16.msra.mxu0 0
        %613 = vmatprep.subr.bf16.mxu0 0
        %614 = vmatpush1.bf16.msra.mxu0 0
        %615 = vmatprep.subr.bf16.mxu0 0
        %616 = vmatpush1.bf16.msra.mxu0 0
        %617 = vmatprep.subr.bf16.mxu0 0
        %618 = vmatpush1.bf16.msra.mxu0 0
        %619 = vmatprep.subr.bf16.mxu0 0
        %620 = vmatpush1.bf16.msra.mxu0 0
        %621 = vmatprep.subr.bf16.mxu0 0
        %622 = vmatpush1.bf16.msra.mxu0 0
        %623 = vmatprep.subr.bf16.mxu0 0
        %624 = vmatpush1.bf16.msra.mxu0 0
        %625 = vmatprep.mubr.bf16.mxu0 0
        %626 = vmatmul.mubr.bf16.gmra.mrb[0].mxu0 %v521
        %v627 = vpop.f32.mrb[0].mxu0
        %v628 = vadd.f32 %v543, %v627
        %v629 = vpop.f32.mrb[0].mxu0
        %v630 = vpop.f32.mrb[0].mxu0
        %v631 = vpop.f32.mrb[0].mxu0
        %632 = vdwg.mxu0
        %v633 = vmax.f32 %v628, 0.0
        %v634 = vpack.c.bf16 %v633, %v633
        %v635 = vld [vmem:[#allocation8] sm:$0xf]
        %v636 = vld [vmem:[#allocation8 + $0x4] sm:$0xf]
        %v637 = vld [vmem:[#allocation8 + $0x8] sm:$0xf]
        %v638 = vld [vmem:[#allocation8 + $0xc] sm:$0xf]
        %v639 = vld [vmem:[#allocation8 + $0x10] sm:$0xf]
        %v640 = vld [vmem:[#allocation8 + $0x14] sm:$0xf]
        %v641 = vld [vmem:[#allocation8 + $0x18] sm:$0xf]
        %v642 = vld [vmem:[#allocation8 + $0x1c] sm:$0xf]
        %v643 = vld [vmem:[#allocation8 + $0x20] sm:$0xf]
        %v644 = vld [vmem:[#allocation8 + $0x24] sm:$0xf]
        %v645 = vld [vmem:[#allocation8 + $0x28] sm:$0xf]
        %v646 = vld [vmem:[#allocation8 + $0x2c] sm:$0xf]
        %v647 = vld [vmem:[#allocation8 + $0x30] sm:$0xf]
        %v648 = vld [vmem:[#allocation8 + $0x34] sm:$0xf]
        %v649 = vld [vmem:[#allocation8 + $0x38] sm:$0xf]
        %v650 = vld [vmem:[#allocation8 + $0x3c] sm:$0xf]
        %v651 = vld [vmem:[%s6] sm:$0x1]
        %v653 = vlaneseq
        %v654 = vshrl.u32 %v653, 7
        %v655 = vsub.s32 0, %v654
        %v656 = vrot.slane %v651, %v655
        %v674 = vunpack.c.l.b16 %v635
        %v675 = vunpack.c.l.b16 %v636
        %v676 = vunpack.c.l.b16 %v637
        %v677 = vunpack.c.l.b16 %v638
        %v678 = vunpack.c.l.b16 %v639
        %v679 = vunpack.c.l.b16 %v640
        %v680 = vunpack.c.l.b16 %v641
        %v681 = vunpack.c.l.b16 %v642
        %v682 = vunpack.c.l.b16 %v643
        %v683 = vunpack.c.l.b16 %v644
        %v684 = vunpack.c.l.b16 %v645
        %v685 = vunpack.c.l.b16 %v646
        %v686 = vunpack.c.l.b16 %v647
        %v687 = vunpack.c.l.b16 %v648
        %v688 = vunpack.c.l.b16 %v649
        %v689 = vunpack.c.l.b16 %v650
        %v690 = vpack.c.b16 %v675, %v674
        %v691 = vpack.c.b16 %v677, %v676
        %v692 = vpack.c.b16 %v679, %v678
        %v693 = vpack.c.b16 %v681, %v680
        %v694 = vpack.c.b16 %v683, %v682
        %v695 = vpack.c.b16 %v685, %v684
        %v696 = vpack.c.b16 %v687, %v686
        %v697 = vpack.c.b16 %v689, %v688
        %706 = vmatprep.subr.bf16.mxu0 0
        %707 = vmatpush1.bf16.msra.mxu0 %v690
        %708 = vmatprep.subr.bf16.mxu0 0
        %709 = vmatpush1.bf16.msra.mxu0 %v691
        %710 = vmatprep.subr.bf16.mxu0 0
        %711 = vmatpush1.bf16.msra.mxu0 %v692
        %712 = vmatprep.subr.bf16.mxu0 0
        %713 = vmatpush1.bf16.msra.mxu0 %v693
        %714 = vmatprep.subr.bf16.mxu0 0
        %715 = vmatpush1.bf16.msra.mxu0 %v694
        %716 = vmatprep.subr.bf16.mxu0 0
        %717 = vmatpush1.bf16.msra.mxu0 %v695
        %718 = vmatprep.subr.bf16.mxu0 0
        %719 = vmatpush1.bf16.msra.mxu0 %v696
        %720 = vmatprep.subr.bf16.mxu0 0
        %721 = vmatpush1.bf16.msra.mxu0 %v697
        %722 = vmatprep.subr.bf16.mxu0 0
        %723 = vmatpush1.bf16.msra.mxu0 0
        %724 = vmatprep.subr.bf16.mxu0 0
        %725 = vmatpush1.bf16.msra.mxu0 0
        %726 = vmatprep.subr.bf16.mxu0 0
        %727 = vmatpush1.bf16.msra.mxu0 0
        %728 = vmatprep.subr.bf16.mxu0 0
        %729 = vmatpush1.bf16.msra.mxu0 0
        %730 = vmatprep.subr.bf16.mxu0 0
        %731 = vmatpush1.bf16.msra.mxu0 0
        %732 = vmatprep.subr.bf16.mxu0 0
        %733 = vmatpush1.bf16.msra.mxu0 0
        %734 = vmatprep.subr.bf16.mxu0 0
        %735 = vmatpush1.bf16.msra.mxu0 0
        %736 = vmatprep.subr.bf16.mxu0 0
        %737 = vmatpush1.bf16.msra.mxu0 0
        %738 = vmatprep.mubr.bf16.mxu0 0
        %739 = vmatmul.mubr.bf16.gmra.mrb[0].mxu0 %v634
        %v740 = vpop.f32.mrb[0].mxu0
        %v741 = vadd.f32 %v656, %v740
        %v742 = vpop.f32.mrb[0].mxu0
        %v743 = vpop.f32.mrb[0].mxu0
        %v744 = vpop.f32.mrb[0].mxu0
        %745 = vdwg.mxu0
        %v746 = vmax.f32 %v741, 0.0
        %v747 = vpack.c.bf16 %v746, %v746
        %v748 = vld [vmem:[#allocation10] sm:$0xf]
        %v749 = vld [vmem:[#allocation10 + $0x4] sm:$0xf]
        %v750 = vld [vmem:[#allocation10 + $0x8] sm:$0xf]
        %v751 = vld [vmem:[#allocation10 + $0xc] sm:$0xf]
        %v752 = vld [vmem:[#allocation10 + $0x10] sm:$0xf]
        %v753 = vld [vmem:[#allocation10 + $0x14] sm:$0xf]
        %v754 = vld [vmem:[#allocation10 + $0x18] sm:$0xf]
        %v755 = vld [vmem:[#allocation10 + $0x1c] sm:$0xf]
        %v756 = vld [vmem:[#allocation10 + $0x20] sm:$0xf]
        %v757 = vld [vmem:[#allocation10 + $0x24] sm:$0xf]
        %v758 = vld [vmem:[#allocation10 + $0x28] sm:$0xf]
        %v759 = vld [vmem:[#allocation10 + $0x2c] sm:$0xf]
        %v760 = vld [vmem:[#allocation10 + $0x30] sm:$0xf]
        %v761 = vld [vmem:[#allocation10 + $0x34] sm:$0xf]
        %v762 = vld [vmem:[#allocation10 + $0x38] sm:$0xf]
        %v763 = vld [vmem:[#allocation10 + $0x3c] sm:$0xf]
        %v764 = vld [vmem:[%s8] sm:$0x1]
        %v766 = vlaneseq
        %v767 = vshrl.u32 %v766, 7
        %v768 = vsub.s32 0, %v767
        %v769 = vrot.slane %v764, %v768
        %v787 = vunpack.c.l.b16 %v748
        %v788 = vunpack.c.l.b16 %v749
        %v789 = vunpack.c.l.b16 %v750
        %v790 = vunpack.c.l.b16 %v751
        %v791 = vunpack.c.l.b16 %v752
        %v792 = vunpack.c.l.b16 %v753
        %v793 = vunpack.c.l.b16 %v754
        %v794 = vunpack.c.l.b16 %v755
        %v795 = vunpack.c.l.b16 %v756
        %v796 = vunpack.c.l.b16 %v757
        %v797 = vunpack.c.l.b16 %v758
        %v798 = vunpack.c.l.b16 %v759
        %v799 = vunpack.c.l.b16 %v760
        %v800 = vunpack.c.l.b16 %v761
        %v801 = vunpack.c.l.b16 %v762
        %v802 = vunpack.c.l.b16 %v763
        %v803 = vpack.c.b16 %v788, %v787
        %v804 = vpack.c.b16 %v790, %v789
        %v805 = vpack.c.b16 %v792, %v791
        %v806 = vpack.c.b16 %v794, %v793
        %v807 = vpack.c.b16 %v796, %v795
        %v808 = vpack.c.b16 %v798, %v797
        %v809 = vpack.c.b16 %v800, %v799
        %v810 = vpack.c.b16 %v802, %v801
        %819 = vmatprep.subr.bf16.mxu0 0
        %820 = vmatpush1.bf16.msra.mxu0 %v803
        %821 = vmatprep.subr.bf16.mxu0 0
        %822 = vmatpush1.bf16.msra.mxu0 %v804
        %823 = vmatprep.subr.bf16.mxu0 0
        %824 = vmatpush1.bf16.msra.mxu0 %v805
        %825 = vmatprep.subr.bf16.mxu0 0
        %826 = vmatpush1.bf16.msra.mxu0 %v806
        %827 = vmatprep.subr.bf16.mxu0 0
        %828 = vmatpush1.bf16.msra.mxu0 %v807
        %829 = vmatprep.subr.bf16.mxu0 0
        %830 = vmatpush1.bf16.msra.mxu0 %v808
        %831 = vmatprep.subr.bf16.mxu0 0
        %832 = vmatpush1.bf16.msra.mxu0 %v809
        %833 = vmatprep.subr.bf16.mxu0 0
        %834 = vmatpush1.bf16.msra.mxu0 %v810
        %835 = vmatprep.subr.bf16.mxu0 0
        %836 = vmatpush1.bf16.msra.mxu0 0
        %837 = vmatprep.subr.bf16.mxu0 0
        %838 = vmatpush1.bf16.msra.mxu0 0
        %839 = vmatprep.subr.bf16.mxu0 0
        %840 = vmatpush1.bf16.msra.mxu0 0
        %841 = vmatprep.subr.bf16.mxu0 0
        %842 = vmatpush1.bf16.msra.mxu0 0
        %843 = vmatprep.subr.bf16.mxu0 0
        %844 = vmatpush1.bf16.msra.mxu0 0
        %845 = vmatprep.subr.bf16.mxu0 0
        %846 = vmatpush1.bf16.msra.mxu0 0
        %847 = vmatprep.subr.bf16.mxu0 0
        %848 = vmatpush1.bf16.msra.mxu0 0
        %849 = vmatprep.subr.bf16.mxu0 0
        %850 = vmatpush1.bf16.msra.mxu0 0
        %851 = vmatprep.mubr.bf16.mxu0 0
        %852 = vmatmul.mubr.bf16.gmra.mrb[0].mxu0 %v747
        %v853 = vpop.f32.mrb[0].mxu0
        %v854 = vadd.f32 %v769, %v853
        %v855 = vpop.f32.mrb[0].mxu0
        %v856 = vpop.f32.mrb[0].mxu0
        %v857 = vpop.f32.mrb[0].mxu0
        %858 = vdwg.mxu0
        %v859 = vmax.f32 %v854, 0.0
        %860 = vst [vmem:[%s405] sm:$0xff] %v859
        %s861 = sand.u32 %s230, 1
        %s862 = scalar_lea.sflag [#allocation4], %s861
        %s863 = sand.u32 %s230, 1
        %s864 = smul.addr %s863, 8
        %s865 = scalar_lea.vmem [#allocation11], %s864
        // Predicated region
        $region77: #{tpu_custom_call.1} parent=55 // pred_check
          %p866 = pneg %p240
        $region78: #{tpu_custom_call.1} parent=55 // pred_check_branch
          %868 = sbr.rel (%p866) target = $region80
        $region79: #{tpu_custom_call.1} parent=55 // pred_region
          %s870 = ssub.s32 128, 128
          %871 = vsyncadd %s862, %s870
          %s872 = smul.addr %s28, 128
          %s873 = scalar_lea.hbm %s9, %s872
          %s875 = sshll.u32 %s865, 4
          %s876 = int_to_ptr.vmem [resolvable:$true] %s875
          %878 = dma.vmem_to_hbm [thread:$0]  %s876, 128, %s873, %s862
        $region80: #{tpu_custom_call.1} parent=55 // pred_fallthru
          _
      $region56: #{tpu_custom_call.1} parent=5 // pred_fallthru
        _
      %p879 = scmp.le.s32.totalorder 2, %s23
      // Predicated region
      $region81: #{tpu_custom_call.1} parent=5 // pred_check
        %p880 = pneg %p879
      $region82: #{tpu_custom_call.1} parent=5 // pred_check_branch
        %882 = sbr.rel (%p880) target = $region84
      $region83: #{tpu_custom_call.1} parent=5 // pred_region
        %s883 = ssub.s32 %s23, 2
        // Predicated region
        $region85: #{tpu_custom_call.1} parent=83 // pred_check
          %p884 = pneg %p246
        $region86: #{tpu_custom_call.1} parent=83 // pred_check_branch
          %886 = sbr.rel (%p884) target = $region88
        $region87: #{tpu_custom_call.1} parent=83 // pred_region
          %s887 = sand.u32 %s231, 1
          %s888 = scalar_lea.sflag [#allocation4], %s887
          %s889 = sand.u32 %s231, 1
          %s890 = smul.addr %s889, 8
          %s891 = scalar_lea.vmem [#allocation11], %s890
          %892 = dma.done %s888, 128
        $region88: #{tpu_custom_call.1} parent=83 // pred_fallthru
          _
      $region84: #{tpu_custom_call.1} parent=5 // pred_fallthru
        _
    $region6: #{tpu_custom_call.1} parent=1 // loop_footer
      %s27 = sadd.s32 1, %s23
    $region7: #{tpu_custom_call.1} parent=1 // loop_footer_branch
      %22 = sbr.rel target = $region3
    $region8: #{tpu_custom_call.1} parent=1 // loop_exit
      _
    %893 = vsyncpa [#allocation3], 1
    %s894 = scalar_lea.sflag [#allocation3], 1
    %895 = vsyncpa %s894, 1
    %896 = vsyncpa [#allocation6], 1
    %897 = vsyncpa [#allocation9], 1
    %898 = vsyncpa [#allocation4], 1
    %s899 = scalar_lea.sflag [#allocation4], 1
    %900 = vsyncpa %s899, 1

</llo_original>
